<compile_context>
chip_gen: v7x
topology: tpu7x:2x2x1
jax: 0.10.0
libtpu: 0.0.40
codegen_flags: <defaults>
</compile_context>

<pallas_src>
import functools

import jax
import jax.numpy as jnp
import numpy as np
from jax import lax
from jax.experimental import pallas as pl
from jax.experimental.pallas import tpu as pltpu


def _round_up(x, m):
    return ((x + m - 1) // m) * m


def _nbytes(a):
    return int(np.prod(a.shape)) * a.dtype.itemsize


def _leaky_relu(x, slope=0.01):
    return jnp.where(x >= 0, x, slope * x)


def _silu(x):
    return x * jax.nn.sigmoid(x)


def _softplus(x):
    # Numerically stable softplus built only from exp/log/abs/max (all of which
    # have direct Mosaic lowerings; avoids relying on log1p support in-kernel).
    return jnp.maximum(x, 0.0) + jnp.log(1.0 + jnp.exp(-jnp.abs(x)))


# ------------------------------ Mamba block kernel ------------------------------


def mamba_kernel(emb_ref, w_in_ref, convw_ref, convb_ref, w_xp_ref, w_dtp_ref,
                 bdt_ref, At_ref, Dp_ref, wout_ref,
                 out_ref,
                 xs_ref, dt_ref, bf_ref, cf_ref, y_ref,
                 *, t_chunk):
    cd = w_in_ref.dtype                       # matmul compute dtype (f32 or bf16)
    emb = emb_ref[0]                          # (L, D_pad), already compute dtype
    L = emb.shape[0]
    K = convw_ref.shape[0]
    d_state, d_inner = At_ref.shape
    dt_rank = w_dtp_ref.shape[0]

    # fused in_proj: one matmul for x and z halves, then lane-slice.
    xz = jnp.dot(emb, w_in_ref[...], preferred_element_type=jnp.float32)
    x_lin = xz[:, :d_inner]
    z_lin = xz[:, d_inner:2 * d_inner]

    # causal depthwise conv1d + SiLU (conv weights / bias hoisted out of the loop).
    convw = convw_ref[...]                    # (K, d_inner) f32
    t_idx = lax.broadcasted_iota(jnp.int32, x_lin.shape, 0)
    acc = jnp.broadcast_to(convb_ref[...], x_lin.shape)
    for k in range(K):                        # static unroll over conv taps
        shift = K - 1 - k
        rolled = x_lin if shift == 0 else pltpu.roll(x_lin, shift, axis=0)
        acc = acc + jnp.where(t_idx >= shift, rolled, 0.0) * convw[k:k + 1, :]
    xs = _silu(acc)
    xs_ref[...] = xs

    # fused x_proj -> (dt_low | B | C), then low-rank dt projection + softplus.
    xdbl = jnp.dot(xs.astype(cd), w_xp_ref[...], preferred_element_type=jnp.float32)
    dt_low = xdbl[:, :dt_rank]
    bf_ref[...] = xdbl[:, dt_rank:dt_rank + d_state]
    cf_ref[...] = xdbl[:, dt_rank + d_state:dt_rank + 2 * d_state]
    dt_ref[...] = _softplus(
        jnp.dot(dt_low.astype(cd), w_dtp_ref[...], preferred_element_type=jnp.float32)
        + bdt_ref[...])

    # selective scan: h kept in registers as a single (d_state, d_inner) tile,
    # vectorized over d_state; timesteps processed in chunks (one y store/chunk).
    At = At_ref[...]                          # (d_state, d_inner) = (-exp(A_log)).T
    Dp = Dp_ref[...]                          # (1, d_inner)
    n_chunks = L // t_chunk

    def chunk_body(c, h):
        start = pl.multiple_of(c * t_chunk, t_chunk)
        dt_c = dt_ref[pl.ds(start, t_chunk), :]     # (t_chunk, d_inner)
        xs_c = xs_ref[pl.ds(start, t_chunk), :]     # (t_chunk, d_inner)
        b_c = bf_ref[pl.ds(start, t_chunk), :]      # (t_chunk, d_state)
        c_c = cf_ref[pl.ds(start, t_chunk), :]      # (t_chunk, d_state)
        ys = []
        for t in range(t_chunk):                    # static unroll inside the chunk
            dt_t = dt_c[t:t + 1, :]                 # (1, d_inner)
            x_t = xs_c[t:t + 1, :]                  # (1, d_inner)
            B_t = b_c[t:t + 1, :]                   # (1, d_state)
            C_t = c_c[t:t + 1, :]                   # (1, d_state)
            b_col = jnp.concatenate(
                [B_t[:, n:n + 1] for n in range(d_state)], axis=0)   # (d_state, 1)
            c_col = jnp.concatenate(
                [C_t[:, n:n + 1] for n in range(d_state)], axis=0)   # (d_state, 1)
            dA = jnp.exp(dt_t * At)                 # (d_state, d_inner), one exp
            h = dA * h + (dt_t * x_t) * b_col       # vectorized state update
            y_t = Dp * x_t + jnp.sum(h * c_col, axis=0, keepdims=True)
            ys.append(y_t)
        y_ref[pl.ds(start, t_chunk), :] = jnp.concatenate(ys, axis=0)
        return h

    h0 = jnp.zeros((d_state, d_inner), jnp.float32)
    lax.fori_loop(0, n_chunks, chunk_body, h0)

    # SiLU gate on z and output projection (output lane-dense: D padded to 128).
    y = y_ref[...] * _silu(z_lin)
    out_ref[0] = jnp.dot(y.astype(cd), wout_ref[...], preferred_element_type=jnp.float32)


def _const_spec(arr):
    nd = arr.ndim
    return pl.BlockSpec(arr.shape, lambda b, _nd=nd: (0,) * _nd)


def pack_mamba_weights(p, d_pad, compute_dtype):
    D = p['wx'].shape[0]
    w_in = jnp.concatenate([p['wx'], p['wz']], axis=1)        # (D, 2*d_inner)
    wout = p['wout']                                          # (d_inner, D)
    if d_pad > D:
        w_in = jnp.pad(w_in, ((0, d_pad - D), (0, 0)))
        wout = jnp.pad(wout, ((0, 0), (0, d_pad - D)))
    w_xp = jnp.concatenate([p['wdt_in'], p['wB'], p['wC']], axis=1)
    return [w_in.astype(compute_dtype), p['convw'], p['convb'],
            w_xp.astype(compute_dtype), p['wdt_proj'].astype(compute_dtype),
            p['bdt'], p['At'], p['Dp'], wout.astype(compute_dtype)]


def mamba_forward(emb, p, *, compute_dtype=jnp.float32):
    B, L, D = emb.shape
    D_pad = _round_up(D, 128)
    d_inner = p['wx'].shape[1]
    d_state = p['At'].shape[0]
    dt_rank = p['wdt_proj'].shape[0]
    K = p['convw'].shape[0]

    weights = pack_mamba_weights(p, D_pad, compute_dtype)
    if D_pad > D:
        emb = jnp.pad(emb, ((0, 0), (0, 0), (0, D_pad - D)))
    emb = emb.astype(compute_dtype)

    t_chunk = next(c for c in (8, 4, 2, 1) if L % c == 0)

    flops = int(B * L * (4 * D_pad * d_inner
                         + 2 * d_inner * (dt_rank + 2 * d_state)
                         + 2 * dt_rank * d_inner + 2 * d_inner * D_pad
                         + 2 * K * d_inner + 10 * d_state * d_inner + 8 * d_inner))
    transcend = int(B * L * (d_state * d_inner + 4 * d_inner))
    bytes_acc = int(_nbytes(emb) + B * L * D_pad * 4
                    + sum(_nbytes(w) for w in weights))

    in_specs = ([pl.BlockSpec((1, L, D_pad), lambda b: (b, 0, 0))]
                + [_const_spec(w) for w in weights])
    out_specs = pl.BlockSpec((1, L, D_pad), lambda b: (b, 0, 0))
    scratch = [
        pltpu.VMEM((L, d_inner), jnp.float32),   # xs
        pltpu.VMEM((L, d_inner), jnp.float32),   # softplus(dt)
        pltpu.VMEM((L, d_state), jnp.float32),   # B
        pltpu.VMEM((L, d_state), jnp.float32),   # C
        pltpu.VMEM((L, d_inner), jnp.float32),   # y
    ]
    return pl.pallas_call(
        functools.partial(mamba_kernel, t_chunk=t_chunk),
        out_shape=jax.ShapeDtypeStruct((B, L, D_pad), jnp.float32),
        grid_spec=pltpu.PrefetchScalarGridSpec(
            num_scalar_prefetch=0, grid=(B,),
            in_specs=in_specs, out_specs=out_specs, scratch_shapes=scratch),
        compiler_params=pltpu.CompilerParams(
            dimension_semantics=("parallel",),
            vmem_limit_bytes=48 * 1024 * 1024),
        cost_estimate=pl.CostEstimate(flops=flops, transcendentals=transcend,
                                      bytes_accessed=bytes_acc),
    )(emb, *weights)


# -------------------------- Expanding MLP heads kernel --------------------------


def make_mlp_kernel(num_layers):
    def kernel(x_ref, *refs):
        out_ref = refs[-1]
        wr = refs[:-1]
        cd = wr[0].dtype                       # matmul compute dtype
        h = x_ref[...].astype(cd)              # (row_tile, D_pad)
        i = 0
        W, b = wr[i][0], wr[i + 1][0]
        i += 2
        h = _leaky_relu(jnp.dot(h, W, preferred_element_type=jnp.float32) + b)
        for _ in range(num_layers - 2):
            W, b, g, beta = wr[i][0], wr[i + 1][0], wr[i + 2][0], wr[i + 3][0]
            i += 4
            h = _leaky_relu(jnp.dot(h.astype(cd), W, preferred_element_type=jnp.float32) + b)
            mu = jnp.mean(h, axis=-1, keepdims=True)                 # LayerNorm in f32
            var = jnp.mean(jnp.square(h - mu), axis=-1, keepdims=True)
            h = (h - mu) * lax.rsqrt(var + 1e-5) * g + beta
        W, b = wr[i][0], wr[i + 1][0]
        out_ref[0] = jnp.dot(h.astype(cd), W, preferred_element_type=jnp.float32) + b
    return kernel


def pack_mlp_weights(mlp, num_layers, D, D_pad, V2, V2_pad, compute_dtype):
    packed = []
    w1 = mlp[0]
    if D_pad > D:                                   # zero rows for padded features
        w1 = jnp.pad(w1, ((0, 0), (0, D_pad - D), (0, 0)))
    packed += [w1.astype(compute_dtype), mlp[1]]
    i = 2
    for _ in range(num_layers - 2):
        packed += [mlp[i].astype(compute_dtype), mlp[i + 1], mlp[i + 2], mlp[i + 3]]
        i += 4
    wl, bl = mlp[i], mlp[i + 1]
    if V2_pad > V2:                                 # lane-dense padded output columns
        wl = jnp.pad(wl, ((0, 0), (0, 0), (0, V2_pad - V2)))
        bl = jnp.pad(bl, ((0, 0), (0, 0), (0, V2_pad - V2)))
    packed += [wl.astype(compute_dtype), bl]
    return packed


def mlp_heads_forward(x2d, head_weights, num_layers, out_dim_pad, *, row_tile):
    N_pad, D_pad = x2d.shape
    H = head_weights[0].shape[0]
    n_row = N_pad // row_tile

    in_specs = [pl.BlockSpec((row_tile, D_pad), lambda h, r: (r, 0))]
    in_specs += [pl.BlockSpec((1,) + tuple(w.shape[1:]), lambda h, r: (h, 0, 0))
                 for w in head_weights]
    out_specs = pl.BlockSpec((1, row_tile, out_dim_pad), lambda h, r: (h, r, 0))

    flops = int(2 * N_pad * sum(int(np.prod(w.shape)) for w in head_weights
                                if w.shape[1] > 1))
    bytes_acc = int(H * _nbytes(x2d) + sum(_nbytes(w) for w in head_weights)
                    + H * N_pad * out_dim_pad * 4)

    return pl.pallas_call(
        make_mlp_kernel(num_layers),
        out_shape=jax.ShapeDtypeStruct((H, N_pad, out_dim_pad), jnp.float32),
        grid_spec=pltpu.PrefetchScalarGridSpec(
            num_scalar_prefetch=0, grid=(H, n_row),
            in_specs=in_specs, out_specs=out_specs),
        compiler_params=pltpu.CompilerParams(
            dimension_semantics=("parallel", "parallel"),
            vmem_limit_bytes=48 * 1024 * 1024),
        cost_estimate=pl.CostEstimate(flops=flops, transcendentals=0,
                                      bytes_accessed=bytes_acc),
    )(x2d, *head_weights)


# ----------------------------- parameters & forward -----------------------------


def init_params(key, *, model_dim, ssm_state_dim, conv_width, expansion,
                vocabulary_size, num_heads, mlp_hidden_dim, mlp_num_layers):
    d_model = model_dim * num_heads
    d_inner = expansion * d_model
    dt_rank = max(1, -(-d_model // 16))
    V2 = vocabulary_size + 2
    keys = iter(jax.random.split(key, 64))

    def lin(k, shape, scale=None):
        fan_in = shape[-2] if len(shape) >= 2 else shape[-1]
        s = (1.0 / np.sqrt(fan_in)) if scale is None else scale
        return jax.random.normal(k, shape, jnp.float32) * s

    emb_tables = jax.random.normal(next(keys), (num_heads, V2, model_dim),
                                   jnp.float32) * 0.3

    A_log = jnp.log(jnp.arange(1, ssm_state_dim + 1, dtype=jnp.float32))
    A = -jnp.exp(jnp.broadcast_to(A_log, (d_inner, ssm_state_dim)))
    mamba = dict(
        wx=lin(next(keys), (d_model, d_inner)),
        wz=lin(next(keys), (d_model, d_inner)),
        convw=lin(next(keys), (conv_width, d_inner), scale=1.0 / np.sqrt(conv_width)),
        convb=lin(next(keys), (1, d_inner), scale=0.1),
        # dt projection kept LOW-RANK (not composed into a dense d_inner x d_inner).
        wdt_in=lin(next(keys), (d_inner, dt_rank)),
        wdt_proj=lin(next(keys), (dt_rank, d_inner), scale=1.0),
        bdt=jax.random.normal(next(keys), (1, d_inner), jnp.float32) * 0.5 - 1.0,
        wB=lin(next(keys), (d_inner, ssm_state_dim)),
        wC=lin(next(keys), (d_inner, ssm_state_dim)),
        At=A.T,                                    # (d_state, d_inner)
        Dp=jnp.ones((1, d_inner), jnp.float32),
        wout=lin(next(keys), (d_inner, d_model)),
    )

    dims = [d_model, mlp_hidden_dim]
    for i in range(mlp_num_layers - 2):
        dims.append(mlp_hidden_dim * 2 ** (i + 1))
    dims.append(V2)
    mlp = [lin(next(keys), (num_heads, dims[0], dims[1])),
           lin(next(keys), (num_heads, 1, dims[1]), scale=0.05)]
    for li in range(mlp_num_layers - 2):
        din, dout = dims[1 + li], dims[2 + li]
        mlp += [lin(next(keys), (num_heads, din, dout)),
                lin(next(keys), (num_heads, 1, dout), scale=0.05),
                jnp.ones((num_heads, 1, dout), jnp.float32),    # LayerNorm gamma
                jnp.zeros((num_heads, 1, dout), jnp.float32)]   # LayerNorm beta
    mlp += [lin(next(keys), (num_heads, dims[-2], dims[-1])),
            lin(next(keys), (num_heads, 1, dims[-1]), scale=0.05)]

    return dict(emb=emb_tables, mamba=mamba, mlp=mlp,
                cfg=dict(num_heads=num_heads, V2=V2,
                         mlp_num_layers=mlp_num_layers))


def chaos_hydra_forward(tokens, params, compute_dtype=jnp.float32):
    cfg = params['cfg']
    H, V2, n_layers = cfg['num_heads'], cfg['V2'], cfg['mlp_num_layers']
    B, L, _ = tokens.shape
    # embedding gather (glue, plain JAX)
    embs = [params['emb'][h][tokens[:, :, h]] for h in range(H)]
    emb = jnp.concatenate(embs, axis=-1).astype(jnp.float32)         # (B, L, D)
    D = emb.shape[-1]

    mamba_out = mamba_forward(emb, params['mamba'], compute_dtype=compute_dtype)
    D_pad = mamba_out.shape[-1]                                      # padded features

    # TODO(synk): the selective scan still runs per-batch on a (1, d_inner) row
    # basis inside each grid step; folding the batch dim into the scan tile
    # ((B, d_inner) per timestep) would further fill sublanes for large B.
    N = B * L
    row_tile = 512 if N >= 512 else _round_up(N, 8)
    N_pad = _round_up(N, row_tile)
    x2d = mamba_out.reshape(N, D_pad)
    if N_pad > N:
        x2d = jnp.pad(x2d, ((0, N_pad - N), (0, 0)))
    x2d = x2d.astype(compute_dtype)

    V2_pad = _round_up(V2, 128)
    mlp_w = pack_mlp_weights(params['mlp'], n_layers, D, D_pad, V2, V2_pad,
                             compute_dtype)
    logits = mlp_heads_forward(x2d, mlp_w, n_layers, V2_pad, row_tile=row_tile)
    logits = logits[:, :N, :V2].reshape(H, B, L, V2)
    pred_logits = jnp.transpose(logits, (1, 3, 2, 0))                # (B, V2, L, H)
    return {'pred_logits': pred_logits}


# ------------------------------- pure-JAX reference ------------------------------


def _mamba_ref(emb, p):
    B, L, _ = emb.shape
    K = p['convw'].shape[0]
    x_lin = emb @ p['wx']
    z_lin = emb @ p['wz']
    xpad = jnp.pad(x_lin, ((0, 0), (K - 1, 0), (0, 0)))
    xc = sum(xpad[:, k:k + L, :] * p['convw'][k] for k in range(K)) + p['convb'][0]
    xs = xc * jax.nn.sigmoid(xc)
    dt = jax.nn.softplus((xs @ p['wdt_in']) @ p['wdt_proj'] + p['bdt'][0])
    Bm = xs @ p['wB']
    Cm = xs @ p['wC']
    A = p['At'].T
    d_state = A.shape[1]

    def step(h, inp):
        dt_t, x_t, B_t, C_t = inp
        dA = jnp.exp(dt_t[..., None] * A)
        h = dA * h + (dt_t * x_t)[..., None] * B_t[:, None, :]
        y = jnp.sum(h * C_t[:, None, :], axis=-1) + p['Dp'][0] * x_t
        return h, y

    h0 = jnp.zeros((B, x_lin.shape[-1], d_state), jnp.float32)
    _, ys = lax.scan(step, h0, (dt.transpose(1, 0, 2), xs.transpose(1, 0, 2),
                                Bm.transpose(1, 0, 2), Cm.transpose(1, 0, 2)))
    y = ys.transpose(1, 0, 2)
    y = y * (z_lin * jax.nn.sigmoid(z_lin))
    return y @ p['wout']


def _mlp_ref(x2d, mlp, num_layers):
    outs = []
    H = mlp[0].shape[0]
    for h in range(H):
        i = 0
        v = x2d
        W, b = mlp[i][h], mlp[i + 1][h]
        i += 2
        v = _leaky_relu(v @ W + b)
        for _ in range(num_layers - 2):
            W, b, g, beta = mlp[i][h], mlp[i + 1][h], mlp[i + 2][h], mlp[i + 3][h]
            i += 4
            v = _leaky_relu(v @ W + b)
            mu = v.mean(-1, keepdims=True)
            var = ((v - mu) ** 2).mean(-1, keepdims=True)
            v = (v - mu) / jnp.sqrt(var + 1e-5) * g + beta
        W, b = mlp[i][h], mlp[i + 1][h]
        outs.append(v @ W + b)
    return jnp.stack(outs, axis=0)


def chaos_hydra_ref(tokens, params):
    H = params['cfg']['num_heads']
    V2 = params['cfg']['V2']
    B, L, _ = tokens.shape
    embs = [params['emb'][h][tokens[:, :, h]] for h in range(H)]
    emb = jnp.concatenate(embs, axis=-1).astype(jnp.float32)
    m = _mamba_ref(emb, params['mamba'])
    x2d = m.reshape(B * L, emb.shape[-1])
    logits = _mlp_ref(x2d, params['mlp'], params['cfg']['mlp_num_layers'])
    logits = logits.reshape(H, B, L, V2)
    return jnp.transpose(logits, (1, 3, 2, 0))


if __name__ == "__main__":
    model_dim = 8
    ssm_state_dim = 4
    conv_width = 4
    expansion = 2
    vocabulary_size = 6
    num_heads = 2
    mlp_hidden_dim = 16
    mlp_num_layers = 3
    B, L = 2, 8

    key = jax.random.PRNGKey(0)
    pkey, tkey = jax.random.split(key)
    params = init_params(pkey, model_dim=model_dim, ssm_state_dim=ssm_state_dim,
                         conv_width=conv_width, expansion=expansion,
                         vocabulary_size=vocabulary_size, num_heads=num_heads,
                         mlp_hidden_dim=mlp_hidden_dim, mlp_num_layers=mlp_num_layers)
    tokens = jax.random.randint(tkey, (B, L, num_heads), 0, vocabulary_size + 2,
                                dtype=jnp.int32)

    # f32 compute path, checked against a high-precision pure-JAX reference.
    # (bf16 matmul operands via compute_dtype=jnp.bfloat16 are supported but not
    #  exercised here to keep the sandbox run short.)
    out = chaos_hydra_forward(tokens, params, compute_dtype=jnp.float32)
    pred = jax.block_until_ready(out['pred_logits'])
    assert pred.shape == (B, vocabulary_size + 2, L, num_heads), pred.shape

    with jax.default_matmul_precision("float32"):
        ref = jax.block_until_ready(chaos_hydra_ref(tokens, params))
    np.testing.assert_allclose(np.asarray(pred), np.asarray(ref),
                               rtol=3e-2, atol=3e-2)

    print("KERNEL_OK")
</pallas_src>

<mosaic_0001>
module attributes {stable_mosaic.version = 11 : i64} {
  func.func @mamba_kernel(%arg0: i32, %arg1: memref<1x8x128xf32, #tpu.memory_space<vmem>>, %arg2: memref<128x64xf32, #tpu.memory_space<vmem>>, %arg3: memref<4x32xf32, #tpu.memory_space<vmem>>, %arg4: memref<1x32xf32, #tpu.memory_space<vmem>>, %arg5: memref<32x9xf32, #tpu.memory_space<vmem>>, %arg6: memref<1x32xf32, #tpu.memory_space<vmem>>, %arg7: memref<1x32xf32, #tpu.memory_space<vmem>>, %arg8: memref<4x32xf32, #tpu.memory_space<vmem>>, %arg9: memref<1x32xf32, #tpu.memory_space<vmem>>, %arg10: memref<32x128xf32, #tpu.memory_space<vmem>>, %arg11: memref<1x8x128xf32, #tpu.memory_space<vmem>>, %arg12: memref<8x32xf32, #tpu.memory_space<vmem>>, %arg13: memref<8x32xf32, #tpu.memory_space<vmem>>, %arg14: memref<8x4xf32, #tpu.memory_space<vmem>>, %arg15: memref<8x4xf32, #tpu.memory_space<vmem>>, %arg16: memref<8x32xf32, #tpu.memory_space<vmem>>) attributes {dimension_semantics = [#tpu.dimension_semantics<parallel>], iteration_bounds = array<i64: 2>, scalar_prefetch = 0 : i64, scratch_operands = 5 : i64, tpu.core_type = #tpu.core_type<tc>, window_params = [{transform_indices = @transform_0, window_bounds = array<i64: 1, 8, 128>}, {pipeline_mode = #tpu.pipeline_mode<synchronous>, transform_indices = @transform_1, window_bounds = array<i64: 128, 64>}, {pipeline_mode = #tpu.pipeline_mode<synchronous>, transform_indices = @transform_2, window_bounds = array<i64: 4, 32>}, {pipeline_mode = #tpu.pipeline_mode<synchronous>, transform_indices = @transform_3, window_bounds = array<i64: 1, 32>}, {pipeline_mode = #tpu.pipeline_mode<synchronous>, transform_indices = @transform_4, window_bounds = array<i64: 32, 9>}, {pipeline_mode = #tpu.pipeline_mode<synchronous>, transform_indices = @transform_5, window_bounds = array<i64: 1, 32>}, {pipeline_mode = #tpu.pipeline_mode<synchronous>, transform_indices = @transform_6, window_bounds = array<i64: 1, 32>}, {pipeline_mode = #tpu.pipeline_mode<synchronous>, transform_indices = @transform_7, window_bounds = array<i64: 4, 32>}, {pipeline_mode = #tpu.pipeline_mode<synchronous>, transform_indices = @transform_8, window_bounds = array<i64: 1, 32>}, {pipeline_mode = #tpu.pipeline_mode<synchronous>, transform_indices = @transform_9, window_bounds = array<i64: 32, 128>}, {transform_indices = @transform_10, window_bounds = array<i64: 1, 8, 128>}]} {
    %c0 = arith.constant 0 : index
    %c0_0 = arith.constant 0 : index
    %c0_1 = arith.constant 0 : index
    %0 = vector.load %arg1[%c0, %c0_0, %c0_1] : memref<1x8x128xf32, #tpu.memory_space<vmem>>, vector<1x8x128xf32>
    %1 = vector.shape_cast %0 : vector<1x8x128xf32> to vector<8x128xf32>
    %c0_2 = arith.constant 0 : index
    %c0_3 = arith.constant 0 : index
    %2 = vector.load %arg2[%c0_2, %c0_3] : memref<128x64xf32, #tpu.memory_space<vmem>>, vector<128x64xf32>
    %cst = arith.constant dense<0.000000e+00> : vector<8x64xf32>
    %3 = tpu.matmul %1, %2, %cst {dimension_numbers = #tpu.dot_dimension_numbers<[1], [0], [0], [1], [0, 0, 1, 1], [], []>} : vector<8x128xf32>, vector<128x64xf32>, vector<8x64xf32> -> vector<8x64xf32>
    %4 = vector.extract_strided_slice %3 {offsets = [0, 0], sizes = [8, 32], strides = [1, 1]} : vector<8x64xf32> to vector<8x32xf32>
    %5 = vector.extract_strided_slice %3 {offsets = [0, 32], sizes = [8, 32], strides = [1, 1]} : vector<8x64xf32> to vector<8x32xf32>
    %c0_4 = arith.constant 0 : index
    %c0_5 = arith.constant 0 : index
    %6 = vector.load %arg3[%c0_4, %c0_5] : memref<4x32xf32, #tpu.memory_space<vmem>>, vector<4x32xf32>
    %7 = tpu.iota {dimensions = array<i32: 0>} : vector<8x32xi32>
    %c0_6 = arith.constant 0 : index
    %c0_7 = arith.constant 0 : index
    %8 = vector.load %arg4[%c0_6, %c0_7] : memref<1x32xf32, #tpu.memory_space<vmem>>, vector<1x32xf32>
    %9 = vector.shape_cast %8 : vector<1x32xf32> to vector<1x32xf32>
    %10 = vector.broadcast %9 : vector<1x32xf32> to vector<8x32xf32>
    %c3_i32 = arith.constant 3 : i32
    %11 = tpu.dynamic_rotate %4 by %c3_i32 dim 0 : vector<8x32xf32>, i32 -> vector<8x32xf32>
    %c3_i32_8 = arith.constant 3 : i32
    %12 = vector.broadcast %c3_i32_8 : i32 to vector<8x32xi32>
    %13 = arith.cmpi sge, %7, %12 : vector<8x32xi32>
    %cst_9 = arith.constant 0.000000e+00 : f32
    %14 = vector.broadcast %cst_9 : f32 to vector<8x32xf32>
    %15 = arith.select %13, %11, %14 : vector<8x32xi1>, vector<8x32xf32>
    %16 = vector.extract_strided_slice %6 {offsets = [0, 0], sizes = [1, 32], strides = [1, 1]} : vector<4x32xf32> to vector<1x32xf32>
    %17 = vector.broadcast %16 : vector<1x32xf32> to vector<8x32xf32>
    %18 = arith.mulf %15, %17 : vector<8x32xf32>
    %19 = arith.addf %10, %18 : vector<8x32xf32>
    %c2_i32 = arith.constant 2 : i32
    %20 = tpu.dynamic_rotate %4 by %c2_i32 dim 0 : vector<8x32xf32>, i32 -> vector<8x32xf32>
    %c2_i32_10 = arith.constant 2 : i32
    %21 = vector.broadcast %c2_i32_10 : i32 to vector<8x32xi32>
    %22 = arith.cmpi sge, %7, %21 : vector<8x32xi32>
    %cst_11 = arith.constant 0.000000e+00 : f32
    %23 = vector.broadcast %cst_11 : f32 to vector<8x32xf32>
    %24 = arith.select %22, %20, %23 : vector<8x32xi1>, vector<8x32xf32>
    %25 = vector.extract_strided_slice %6 {offsets = [1, 0], sizes = [1, 32], strides = [1, 1]} : vector<4x32xf32> to vector<1x32xf32>
    %26 = vector.broadcast %25 : vector<1x32xf32> to vector<8x32xf32>
    %27 = arith.mulf %24, %26 : vector<8x32xf32>
    %28 = arith.addf %19, %27 : vector<8x32xf32>
    %c1_i32 = arith.constant 1 : i32
    %29 = tpu.dynamic_rotate %4 by %c1_i32 dim 0 : vector<8x32xf32>, i32 -> vector<8x32xf32>
    %c1_i32_12 = arith.constant 1 : i32
    %30 = vector.broadcast %c1_i32_12 : i32 to vector<8x32xi32>
    %31 = arith.cmpi sge, %7, %30 : vector<8x32xi32>
    %cst_13 = arith.constant 0.000000e+00 : f32
    %32 = vector.broadcast %cst_13 : f32 to vector<8x32xf32>
    %33 = arith.select %31, %29, %32 : vector<8x32xi1>, vector<8x32xf32>
    %34 = vector.extract_strided_slice %6 {offsets = [2, 0], sizes = [1, 32], strides = [1, 1]} : vector<4x32xf32> to vector<1x32xf32>
    %35 = vector.broadcast %34 : vector<1x32xf32> to vector<8x32xf32>
    %36 = arith.mulf %33, %35 : vector<8x32xf32>
    %37 = arith.addf %28, %36 : vector<8x32xf32>
    %c0_i32 = arith.constant 0 : i32
    %38 = vector.broadcast %c0_i32 : i32 to vector<8x32xi32>
    %39 = arith.cmpi sge, %7, %38 : vector<8x32xi32>
    %cst_14 = arith.constant 0.000000e+00 : f32
    %40 = vector.broadcast %cst_14 : f32 to vector<8x32xf32>
    %41 = arith.select %39, %4, %40 : vector<8x32xi1>, vector<8x32xf32>
    %42 = vector.extract_strided_slice %6 {offsets = [3, 0], sizes = [1, 32], strides = [1, 1]} : vector<4x32xf32> to vector<1x32xf32>
    %43 = vector.broadcast %42 : vector<1x32xf32> to vector<8x32xf32>
    %44 = arith.mulf %41, %43 : vector<8x32xf32>
    %45 = arith.addf %37, %44 : vector<8x32xf32>
    %46 = arith.negf %45 : vector<8x32xf32>
    %47 = math.exp %46 : vector<8x32xf32>
    %cst_15 = arith.constant 1.000000e+00 : f32
    %48 = vector.broadcast %cst_15 : f32 to vector<8x32xf32>
    %49 = arith.addf %48, %47 : vector<8x32xf32>
    %50 = arith.divf %48, %49 : vector<8x32xf32>
    %51 = arith.mulf %45, %50 : vector<8x32xf32>
    %c0_16 = arith.constant 0 : index
    %c0_17 = arith.constant 0 : index
    %52 = vector.load %arg12[%c0_16, %c0_17] : memref<8x32xf32, #tpu.memory_space<vmem>>, vector<8x32xf32>
    tpu.vector_store %arg12[%c0_16, %c0_17], %51 {strides = array<i32>} : memref<8x32xf32, #tpu.memory_space<vmem>>, vector<8x32xf32>,
    %c0_18 = arith.constant 0 : index
    %c0_19 = arith.constant 0 : index
    %53 = vector.load %arg5[%c0_18, %c0_19] : memref<32x9xf32, #tpu.memory_space<vmem>>, vector<32x9xf32>
    %cst_20 = arith.constant dense<0.000000e+00> : vector<8x9xf32>
    %54 = tpu.matmul %51, %53, %cst_20 {dimension_numbers = #tpu.dot_dimension_numbers<[1], [0], [0], [1], [0, 0, 1, 1], [], []>} : vector<8x32xf32>, vector<32x9xf32>, vector<8x9xf32> -> vector<8x9xf32>
    %55 = vector.extract_strided_slice %54 {offsets = [0, 0], sizes = [8, 1], strides = [1, 1]} : vector<8x9xf32> to vector<8x1xf32>
    %56 = vector.extract_strided_slice %54 {offsets = [0, 1], sizes = [8, 4], strides = [1, 1]} : vector<8x9xf32> to vector<8x4xf32>
    %c0_21 = arith.constant 0 : index
    %c0_22 = arith.constant 0 : index
    %57 = vector.load %arg14[%c0_21, %c0_22] : memref<8x4xf32, #tpu.memory_space<vmem>>, vector<8x4xf32>
    tpu.vector_store %arg14[%c0_21, %c0_22], %56 {strides = array<i32>} : memref<8x4xf32, #tpu.memory_space<vmem>>, vector<8x4xf32>,
    %58 = vector.extract_strided_slice %54 {offsets = [0, 5], sizes = [8, 4], strides = [1, 1]} : vector<8x9xf32> to vector<8x4xf32>
    %c0_23 = arith.constant 0 : index
    %c0_24 = arith.constant 0 : index
    %59 = vector.load %arg15[%c0_23, %c0_24] : memref<8x4xf32, #tpu.memory_space<vmem>>, vector<8x4xf32>
    tpu.vector_store %arg15[%c0_23, %c0_24], %58 {strides = array<i32>} : memref<8x4xf32, #tpu.memory_space<vmem>>, vector<8x4xf32>,
    %c0_25 = arith.constant 0 : index
    %c0_26 = arith.constant 0 : index
    %60 = vector.load %arg6[%c0_25, %c0_26] : memref<1x32xf32, #tpu.memory_space<vmem>>, vector<1x32xf32>
    %cst_27 = arith.constant dense<0.000000e+00> : vector<8x32xf32>
    %61 = tpu.matmul %55, %60, %cst_27 {dimension_numbers = #tpu.dot_dimension_numbers<[1], [0], [0], [1], [0, 0, 1, 1], [], []>} : vector<8x1xf32>, vector<1x32xf32>, vector<8x32xf32> -> vector<8x32xf32>
    %c0_28 = arith.constant 0 : index
    %c0_29 = arith.constant 0 : index
    %62 = vector.load %arg7[%c0_28, %c0_29] : memref<1x32xf32, #tpu.memory_space<vmem>>, vector<1x32xf32>
    %63 = vector.broadcast %62 : vector<1x32xf32> to vector<8x32xf32>
    %64 = arith.addf %61, %63 : vector<8x32xf32>
    %cst_30 = arith.constant 0.000000e+00 : f32
    %65 = vector.broadcast %cst_30 : f32 to vector<8x32xf32>
    %66 = arith.maximumf %64, %65 : vector<8x32xf32>
    %67 = math.absf %64 : vector<8x32xf32>
    %cst_31 = arith.constant 0.000000e+00 : f32
    %68 = vector.broadcast %cst_31 : f32 to vector<8x32xf32>
    %69 = arith.subf %68, %67 : vector<8x32xf32>
    %70 = math.exp %69 : vector<8x32xf32>
    %cst_32 = arith.constant 1.000000e+00 : f32
    %71 = vector.broadcast %cst_32 : f32 to vector<8x32xf32>
    %72 = arith.addf %71, %70 : vector<8x32xf32>
    %73 = math.log %72 : vector<8x32xf32>
    %74 = arith.addf %66, %73 : vector<8x32xf32>
    %c0_33 = arith.constant 0 : index
    %c0_34 = arith.constant 0 : index
    %75 = vector.load %arg13[%c0_33, %c0_34] : memref<8x32xf32, #tpu.memory_space<vmem>>, vector<8x32xf32>
    tpu.vector_store %arg13[%c0_33, %c0_34], %74 {strides = array<i32>} : memref<8x32xf32, #tpu.memory_space<vmem>>, vector<8x32xf32>,
    %c0_35 = arith.constant 0 : index
    %c0_36 = arith.constant 0 : index
    %76 = vector.load %arg8[%c0_35, %c0_36] : memref<4x32xf32, #tpu.memory_space<vmem>>, vector<4x32xf32>
    %c0_37 = arith.constant 0 : index
    %c0_38 = arith.constant 0 : index
    %77 = vector.load %arg9[%c0_37, %c0_38] : memref<1x32xf32, #tpu.memory_space<vmem>>, vector<1x32xf32>
    %cst_39 = arith.constant 0.000000e+00 : f32
    %78 = vector.broadcast %cst_39 : f32 to vector<4x32xf32>
    %c0_i32_40 = arith.constant 0 : i32
    %c8_i32 = arith.constant 8 : i32
    %79 = arith.muli %c0_i32_40, %c8_i32 : i32
    %80 = tpu.assume_multiple %79, 8 : i32
    %81 = arith.index_cast %80 : i32 to index
    %c0_41 = arith.constant 0 : index
    %82 = vector.load %arg13[%81, %c0_41] : memref<8x32xf32, #tpu.memory_space<vmem>>, vector<8x32xf32>
    %83 = arith.index_cast %80 : i32 to index
    %c0_42 = arith.constant 0 : index
    %84 = vector.load %arg12[%83, %c0_42] : memref<8x32xf32, #tpu.memory_space<vmem>>, vector<8x32xf32>
    %85 = arith.index_cast %80 : i32 to index
    %c0_43 = arith.constant 0 : index
    %86 = vector.load %arg14[%85, %c0_43] : memref<8x4xf32, #tpu.memory_space<vmem>>, vector<8x4xf32>
    %87 = arith.index_cast %80 : i32 to index
    %c0_44 = arith.constant 0 : index
    %88 = vector.load %arg15[%87, %c0_44] : memref<8x4xf32, #tpu.memory_space<vmem>>, vector<8x4xf32>
    %89 = vector.extract_strided_slice %82 {offsets = [0, 0], sizes = [1, 32], strides = [1, 1]} : vector<8x32xf32> to vector<1x32xf32>
    %90 = vector.extract_strided_slice %84 {offsets = [0, 0], sizes = [1, 32], strides = [1, 1]} : vector<8x32xf32> to vector<1x32xf32>
    %91 = vector.extract_strided_slice %86 {offsets = [0, 0], sizes = [1, 4], strides = [1, 1]} : vector<8x4xf32> to vector<1x4xf32>
    %92 = vector.extract_strided_slice %88 {offsets = [0, 0], sizes = [1, 4], strides = [1, 1]} : vector<8x4xf32> to vector<1x4xf32>
    %93 = vector.extract_strided_slice %91 {offsets = [0, 0], sizes = [1, 1], strides = [1, 1]} : vector<1x4xf32> to vector<1x1xf32>
    %94 = vector.extract_strided_slice %91 {offsets = [0, 1], sizes = [1, 1], strides = [1, 1]} : vector<1x4xf32> to vector<1x1xf32>
    %95 = vector.extract_strided_slice %91 {offsets = [0, 2], sizes = [1, 1], strides = [1, 1]} : vector<1x4xf32> to vector<1x1xf32>
    %96 = vector.extract_strided_slice %91 {offsets = [0, 3], sizes = [1, 1], strides = [1, 1]} : vector<1x4xf32> to vector<1x1xf32>
    %97 = tpu.concatenate %93, %94, %95, %96 in 0 : vector<1x1xf32>, vector<1x1xf32>, vector<1x1xf32>, vector<1x1xf32> -> vector<4x1xf32>
    %98 = vector.extract_strided_slice %92 {offsets = [0, 0], sizes = [1, 1], strides = [1, 1]} : vector<1x4xf32> to vector<1x1xf32>
    %99 = vector.extract_strided_slice %92 {offsets = [0, 1], sizes = [1, 1], strides = [1, 1]} : vector<1x4xf32> to vector<1x1xf32>
    %100 = vector.extract_strided_slice %92 {offsets = [0, 2], sizes = [1, 1], strides = [1, 1]} : vector<1x4xf32> to vector<1x1xf32>
    %101 = vector.extract_strided_slice %92 {offsets = [0, 3], sizes = [1, 1], strides = [1, 1]} : vector<1x4xf32> to vector<1x1xf32>
    %102 = tpu.concatenate %98, %99, %100, %101 in 0 : vector<1x1xf32>, vector<1x1xf32>, vector<1x1xf32>, vector<1x1xf32> -> vector<4x1xf32>
    %103 = vector.broadcast %89 : vector<1x32xf32> to vector<4x32xf32>
    %104 = arith.mulf %103, %76 : vector<4x32xf32>
    %105 = math.exp %104 : vector<4x32xf32>
    %106 = arith.mulf %105, %78 : vector<4x32xf32>
    %107 = arith.mulf %89, %90 : vector<1x32xf32>
    %108 = vector.broadcast %107 : vector<1x32xf32> to vector<4x32xf32>
    %109 = vector.broadcast %97 : vector<4x1xf32> to vector<4x32xf32>
    %110 = arith.mulf %108, %109 : vector<4x32xf32>
    %111 = arith.addf %106, %110 : vector<4x32xf32>
    %112 = arith.mulf %77, %90 : vector<1x32xf32>
    %113 = vector.broadcast %102 : vector<4x1xf32> to vector<4x32xf32>
    %114 = arith.mulf %111, %113 : vector<4x32xf32>
    %cst_45 = arith.constant dense<0.000000e+00> : vector<32xf32>
    %115 = vector.multi_reduction <add>, %114, %cst_45 [0] : vector<4x32xf32> to vector<32xf32>
    %116 = vector.shape_cast %115 : vector<32xf32> to vector<1x32xf32>
    %117 = arith.addf %112, %116 : vector<1x32xf32>
    %118 = vector.extract_strided_slice %82 {offsets = [1, 0], sizes = [1, 32], strides = [1, 1]} : vector<8x32xf32> to vector<1x32xf32>
    %119 = vector.extract_strided_slice %84 {offsets = [1, 0], sizes = [1, 32], strides = [1, 1]} : vector<8x32xf32> to vector<1x32xf32>
    %120 = vector.extract_strided_slice %86 {offsets = [1, 0], sizes = [1, 4], strides = [1, 1]} : vector<8x4xf32> to vector<1x4xf32>
    %121 = vector.extract_strided_slice %88 {offsets = [1, 0], sizes = [1, 4], strides = [1, 1]} : vector<8x4xf32> to vector<1x4xf32>
    %122 = vector.extract_strided_slice %120 {offsets = [0, 0], sizes = [1, 1], strides = [1, 1]} : vector<1x4xf32> to vector<1x1xf32>
    %123 = vector.extract_strided_slice %120 {offsets = [0, 1], sizes = [1, 1], strides = [1, 1]} : vector<1x4xf32> to vector<1x1xf32>
    %124 = vector.extract_strided_slice %120 {offsets = [0, 2], sizes = [1, 1], strides = [1, 1]} : vector<1x4xf32> to vector<1x1xf32>
    %125 = vector.extract_strided_slice %120 {offsets = [0, 3], sizes = [1, 1], strides = [1, 1]} : vector<1x4xf32> to vector<1x1xf32>
    %126 = tpu.concatenate %122, %123, %124, %125 in 0 : vector<1x1xf32>, vector<1x1xf32>, vector<1x1xf32>, vector<1x1xf32> -> vector<4x1xf32>
    %127 = vector.extract_strided_slice %121 {offsets = [0, 0], sizes = [1, 1], strides = [1, 1]} : vector<1x4xf32> to vector<1x1xf32>
    %128 = vector.extract_strided_slice %121 {offsets = [0, 1], sizes = [1, 1], strides = [1, 1]} : vector<1x4xf32> to vector<1x1xf32>
    %129 = vector.extract_strided_slice %121 {offsets = [0, 2], sizes = [1, 1], strides = [1, 1]} : vector<1x4xf32> to vector<1x1xf32>
    %130 = vector.extract_strided_slice %121 {offsets = [0, 3], sizes = [1, 1], strides = [1, 1]} : vector<1x4xf32> to vector<1x1xf32>
    %131 = tpu.concatenate %127, %128, %129, %130 in 0 : vector<1x1xf32>, vector<1x1xf32>, vector<1x1xf32>, vector<1x1xf32> -> vector<4x1xf32>
    %132 = vector.broadcast %118 : vector<1x32xf32> to vector<4x32xf32>
    %133 = arith.mulf %132, %76 : vector<4x32xf32>
    %134 = math.exp %133 : vector<4x32xf32>
    %135 = arith.mulf %134, %111 : vector<4x32xf32>
    %136 = arith.mulf %118, %119 : vector<1x32xf32>
    %137 = vector.broadcast %136 : vector<1x32xf32> to vector<4x32xf32>
    %138 = vector.broadcast %126 : vector<4x1xf32> to vector<4x32xf32>
    %139 = arith.mulf %137, %138 : vector<4x32xf32>
    %140 = arith.addf %135, %139 : vector<4x32xf32>
    %141 = arith.mulf %77, %119 : vector<1x32xf32>
    %142 = vector.broadcast %131 : vector<4x1xf32> to vector<4x32xf32>
    %143 = arith.mulf %140, %142 : vector<4x32xf32>
    %cst_46 = arith.constant dense<0.000000e+00> : vector<32xf32>
    %144 = vector.multi_reduction <add>, %143, %cst_46 [0] : vector<4x32xf32> to vector<32xf32>
    %145 = vector.shape_cast %144 : vector<32xf32> to vector<1x32xf32>
    %146 = arith.addf %141, %145 : vector<1x32xf32>
    %147 = vector.extract_strided_slice %82 {offsets = [2, 0], sizes = [1, 32], strides = [1, 1]} : vector<8x32xf32> to vector<1x32xf32>
    %148 = vector.extract_strided_slice %84 {offsets = [2, 0], sizes = [1, 32], strides = [1, 1]} : vector<8x32xf32> to vector<1x32xf32>
    %149 = vector.extract_strided_slice %86 {offsets = [2, 0], sizes = [1, 4], strides = [1, 1]} : vector<8x4xf32> to vector<1x4xf32>
    %150 = vector.extract_strided_slice %88 {offsets = [2, 0], sizes = [1, 4], strides = [1, 1]} : vector<8x4xf32> to vector<1x4xf32>
    %151 = vector.extract_strided_slice %149 {offsets = [0, 0], sizes = [1, 1], strides = [1, 1]} : vector<1x4xf32> to vector<1x1xf32>
    %152 = vector.extract_strided_slice %149 {offsets = [0, 1], sizes = [1, 1], strides = [1, 1]} : vector<1x4xf32> to vector<1x1xf32>
    %153 = vector.extract_strided_slice %149 {offsets = [0, 2], sizes = [1, 1], strides = [1, 1]} : vector<1x4xf32> to vector<1x1xf32>
    %154 = vector.extract_strided_slice %149 {offsets = [0, 3], sizes = [1, 1], strides = [1, 1]} : vector<1x4xf32> to vector<1x1xf32>
    %155 = tpu.concatenate %151, %152, %153, %154 in 0 : vector<1x1xf32>, vector<1x1xf32>, vector<1x1xf32>, vector<1x1xf32> -> vector<4x1xf32>
    %156 = vector.extract_strided_slice %150 {offsets = [0, 0], sizes = [1, 1], strides = [1, 1]} : vector<1x4xf32> to vector<1x1xf32>
    %157 = vector.extract_strided_slice %150 {offsets = [0, 1], sizes = [1, 1], strides = [1, 1]} : vector<1x4xf32> to vector<1x1xf32>
    %158 = vector.extract_strided_slice %150 {offsets = [0, 2], sizes = [1, 1], strides = [1, 1]} : vector<1x4xf32> to vector<1x1xf32>
    %159 = vector.extract_strided_slice %150 {offsets = [0, 3], sizes = [1, 1], strides = [1, 1]} : vector<1x4xf32> to vector<1x1xf32>
    %160 = tpu.concatenate %156, %157, %158, %159 in 0 : vector<1x1xf32>, vector<1x1xf32>, vector<1x1xf32>, vector<1x1xf32> -> vector<4x1xf32>
    %161 = vector.broadcast %147 : vector<1x32xf32> to vector<4x32xf32>
    %162 = arith.mulf %161, %76 : vector<4x32xf32>
    %163 = math.exp %162 : vector<4x32xf32>
    %164 = arith.mulf %163, %140 : vector<4x32xf32>
    %165 = arith.mulf %147, %148 : vector<1x32xf32>
    %166 = vector.broadcast %165 : vector<1x32xf32> to vector<4x32xf32>
    %167 = vector.broadcast %155 : vector<4x1xf32> to vector<4x32xf32>
    %168 = arith.mulf %166, %167 : vector<4x32xf32>
    %169 = arith.addf %164, %168 : vector<4x32xf32>
    %170 = arith.mulf %77, %148 : vector<1x32xf32>
    %171 = vector.broadcast %160 : vector<4x1xf32> to vector<4x32xf32>
    %172 = arith.mulf %169, %171 : vector<4x32xf32>
    %cst_47 = arith.constant dense<0.000000e+00> : vector<32xf32>
    %173 = vector.multi_reduction <add>, %172, %cst_47 [0] : vector<4x32xf32> to vector<32xf32>
    %174 = vector.shape_cast %173 : vector<32xf32> to vector<1x32xf32>
    %175 = arith.addf %170, %174 : vector<1x32xf32>
    %176 = vector.extract_strided_slice %82 {offsets = [3, 0], sizes = [1, 32], strides = [1, 1]} : vector<8x32xf32> to vector<1x32xf32>
    %177 = vector.extract_strided_slice %84 {offsets = [3, 0], sizes = [1, 32], strides = [1, 1]} : vector<8x32xf32> to vector<1x32xf32>
    %178 = vector.extract_strided_slice %86 {offsets = [3, 0], sizes = [1, 4], strides = [1, 1]} : vector<8x4xf32> to vector<1x4xf32>
    %179 = vector.extract_strided_slice %88 {offsets = [3, 0], sizes = [1, 4], strides = [1, 1]} : vector<8x4xf32> to vector<1x4xf32>
    %180 = vector.extract_strided_slice %178 {offsets = [0, 0], sizes = [1, 1], strides = [1, 1]} : vector<1x4xf32> to vector<1x1xf32>
    %181 = vector.extract_strided_slice %178 {offsets = [0, 1], sizes = [1, 1], strides = [1, 1]} : vector<1x4xf32> to vector<1x1xf32>
    %182 = vector.extract_strided_slice %178 {offsets = [0, 2], sizes = [1, 1], strides = [1, 1]} : vector<1x4xf32> to vector<1x1xf32>
    %183 = vector.extract_strided_slice %178 {offsets = [0, 3], sizes = [1, 1], strides = [1, 1]} : vector<1x4xf32> to vector<1x1xf32>
    %184 = tpu.concatenate %180, %181, %182, %183 in 0 : vector<1x1xf32>, vector<1x1xf32>, vector<1x1xf32>, vector<1x1xf32> -> vector<4x1xf32>
    %185 = vector.extract_strided_slice %179 {offsets = [0, 0], sizes = [1, 1], strides = [1, 1]} : vector<1x4xf32> to vector<1x1xf32>
    %186 = vector.extract_strided_slice %179 {offsets = [0, 1], sizes = [1, 1], strides = [1, 1]} : vector<1x4xf32> to vector<1x1xf32>
    %187 = vector.extract_strided_slice %179 {offsets = [0, 2], sizes = [1, 1], strides = [1, 1]} : vector<1x4xf32> to vector<1x1xf32>
    %188 = vector.extract_strided_slice %179 {offsets = [0, 3], sizes = [1, 1], strides = [1, 1]} : vector<1x4xf32> to vector<1x1xf32>
    %189 = tpu.concatenate %185, %186, %187, %188 in 0 : vector<1x1xf32>, vector<1x1xf32>, vector<1x1xf32>, vector<1x1xf32> -> vector<4x1xf32>
    %190 = vector.broadcast %176 : vector<1x32xf32> to vector<4x32xf32>
    %191 = arith.mulf %190, %76 : vector<4x32xf32>
    %192 = math.exp %191 : vector<4x32xf32>
    %193 = arith.mulf %192, %169 : vector<4x32xf32>
    %194 = arith.mulf %176, %177 : vector<1x32xf32>
    %195 = vector.broadcast %194 : vector<1x32xf32> to vector<4x32xf32>
    %196 = vector.broadcast %184 : vector<4x1xf32> to vector<4x32xf32>
    %197 = arith.mulf %195, %196 : vector<4x32xf32>
    %198 = arith.addf %193, %197 : vector<4x32xf32>
    %199 = arith.mulf %77, %177 : vector<1x32xf32>
    %200 = vector.broadcast %189 : vector<4x1xf32> to vector<4x32xf32>
    %201 = arith.mulf %198, %200 : vector<4x32xf32>
    %cst_48 = arith.constant dense<0.000000e+00> : vector<32xf32>
    %202 = vector.multi_reduction <add>, %201, %cst_48 [0] : vector<4x32xf32> to vector<32xf32>
    %203 = vector.shape_cast %202 : vector<32xf32> to vector<1x32xf32>
    %204 = arith.addf %199, %203 : vector<1x32xf32>
    %205 = vector.extract_strided_slice %82 {offsets = [4, 0], sizes = [1, 32], strides = [1, 1]} : vector<8x32xf32> to vector<1x32xf32>
    %206 = vector.extract_strided_slice %84 {offsets = [4, 0], sizes = [1, 32], strides = [1, 1]} : vector<8x32xf32> to vector<1x32xf32>
    %207 = vector.extract_strided_slice %86 {offsets = [4, 0], sizes = [1, 4], strides = [1, 1]} : vector<8x4xf32> to vector<1x4xf32>
    %208 = vector.extract_strided_slice %88 {offsets = [4, 0], sizes = [1, 4], strides = [1, 1]} : vector<8x4xf32> to vector<1x4xf32>
    %209 = vector.extract_strided_slice %207 {offsets = [0, 0], sizes = [1, 1], strides = [1, 1]} : vector<1x4xf32> to vector<1x1xf32>
    %210 = vector.extract_strided_slice %207 {offsets = [0, 1], sizes = [1, 1], strides = [1, 1]} : vector<1x4xf32> to vector<1x1xf32>
    %211 = vector.extract_strided_slice %207 {offsets = [0, 2], sizes = [1, 1], strides = [1, 1]} : vector<1x4xf32> to vector<1x1xf32>
    %212 = vector.extract_strided_slice %207 {offsets = [0, 3], sizes = [1, 1], strides = [1, 1]} : vector<1x4xf32> to vector<1x1xf32>
    %213 = tpu.concatenate %209, %210, %211, %212 in 0 : vector<1x1xf32>, vector<1x1xf32>, vector<1x1xf32>, vector<1x1xf32> -> vector<4x1xf32>
    %214 = vector.extract_strided_slice %208 {offsets = [0, 0], sizes = [1, 1], strides = [1, 1]} : vector<1x4xf32> to vector<1x1xf32>
    %215 = vector.extract_strided_slice %208 {offsets = [0, 1], sizes = [1, 1], strides = [1, 1]} : vector<1x4xf32> to vector<1x1xf32>
    %216 = vector.extract_strided_slice %208 {offsets = [0, 2], sizes = [1, 1], strides = [1, 1]} : vector<1x4xf32> to vector<1x1xf32>
    %217 = vector.extract_strided_slice %208 {offsets = [0, 3], sizes = [1, 1], strides = [1, 1]} : vector<1x4xf32> to vector<1x1xf32>
    %218 = tpu.concatenate %214, %215, %216, %217 in 0 : vector<1x1xf32>, vector<1x1xf32>, vector<1x1xf32>, vector<1x1xf32> -> vector<4x1xf32>
    %219 = vector.broadcast %205 : vector<1x32xf32> to vector<4x32xf32>
    %220 = arith.mulf %219, %76 : vector<4x32xf32>
    %221 = math.exp %220 : vector<4x32xf32>
    %222 = arith.mulf %221, %198 : vector<4x32xf32>
    %223 = arith.mulf %205, %206 : vector<1x32xf32>
    %224 = vector.broadcast %223 : vector<1x32xf32> to vector<4x32xf32>
    %225 = vector.broadcast %213 : vector<4x1xf32> to vector<4x32xf32>
    %226 = arith.mulf %224, %225 : vector<4x32xf32>
    %227 = arith.addf %222, %226 : vector<4x32xf32>
    %228 = arith.mulf %77, %206 : vector<1x32xf32>
    %229 = vector.broadcast %218 : vector<4x1xf32> to vector<4x32xf32>
    %230 = arith.mulf %227, %229 : vector<4x32xf32>
    %cst_49 = arith.constant dense<0.000000e+00> : vector<32xf32>
    %231 = vector.multi_reduction <add>, %230, %cst_49 [0] : vector<4x32xf32> to vector<32xf32>
    %232 = vector.shape_cast %231 : vector<32xf32> to vector<1x32xf32>
    %233 = arith.addf %228, %232 : vector<1x32xf32>
    %234 = vector.extract_strided_slice %82 {offsets = [5, 0], sizes = [1, 32], strides = [1, 1]} : vector<8x32xf32> to vector<1x32xf32>
    %235 = vector.extract_strided_slice %84 {offsets = [5, 0], sizes = [1, 32], strides = [1, 1]} : vector<8x32xf32> to vector<1x32xf32>
    %236 = vector.extract_strided_slice %86 {offsets = [5, 0], sizes = [1, 4], strides = [1, 1]} : vector<8x4xf32> to vector<1x4xf32>
    %237 = vector.extract_strided_slice %88 {offsets = [5, 0], sizes = [1, 4], strides = [1, 1]} : vector<8x4xf32> to vector<1x4xf32>
    %238 = vector.extract_strided_slice %236 {offsets = [0, 0], sizes = [1, 1], strides = [1, 1]} : vector<1x4xf32> to vector<1x1xf32>
    %239 = vector.extract_strided_slice %236 {offsets = [0, 1], sizes = [1, 1], strides = [1, 1]} : vector<1x4xf32> to vector<1x1xf32>
    %240 = vector.extract_strided_slice %236 {offsets = [0, 2], sizes = [1, 1], strides = [1, 1]} : vector<1x4xf32> to vector<1x1xf32>
    %241 = vector.extract_strided_slice %236 {offsets = [0, 3], sizes = [1, 1], strides = [1, 1]} : vector<1x4xf32> to vector<1x1xf32>
    %242 = tpu.concatenate %238, %239, %240, %241 in 0 : vector<1x1xf32>, vector<1x1xf32>, vector<1x1xf32>, vector<1x1xf32> -> vector<4x1xf32>
    %243 = vector.extract_strided_slice %237 {offsets = [0, 0], sizes = [1, 1], strides = [1, 1]} : vector<1x4xf32> to vector<1x1xf32>
    %244 = vector.extract_strided_slice %237 {offsets = [0, 1], sizes = [1, 1], strides = [1, 1]} : vector<1x4xf32> to vector<1x1xf32>
    %245 = vector.extract_strided_slice %237 {offsets = [0, 2], sizes = [1, 1], strides = [1, 1]} : vector<1x4xf32> to vector<1x1xf32>
    %246 = vector.extract_strided_slice %237 {offsets = [0, 3], sizes = [1, 1], strides = [1, 1]} : vector<1x4xf32> to vector<1x1xf32>
    %247 = tpu.concatenate %243, %244, %245, %246 in 0 : vector<1x1xf32>, vector<1x1xf32>, vector<1x1xf32>, vector<1x1xf32> -> vector<4x1xf32>
    %248 = vector.broadcast %234 : vector<1x32xf32> to vector<4x32xf32>
    %249 = arith.mulf %248, %76 : vector<4x32xf32>
    %250 = math.exp %249 : vector<4x32xf32>
    %251 = arith.mulf %250, %227 : vector<4x32xf32>
    %252 = arith.mulf %234, %235 : vector<1x32xf32>
    %253 = vector.broadcast %252 : vector<1x32xf32> to vector<4x32xf32>
    %254 = vector.broadcast %242 : vector<4x1xf32> to vector<4x32xf32>
    %255 = arith.mulf %253, %254 : vector<4x32xf32>
    %256 = arith.addf %251, %255 : vector<4x32xf32>
    %257 = arith.mulf %77, %235 : vector<1x32xf32>
    %258 = vector.broadcast %247 : vector<4x1xf32> to vector<4x32xf32>
    %259 = arith.mulf %256, %258 : vector<4x32xf32>
    %cst_50 = arith.constant dense<0.000000e+00> : vector<32xf32>
    %260 = vector.multi_reduction <add>, %259, %cst_50 [0] : vector<4x32xf32> to vector<32xf32>
    %261 = vector.shape_cast %260 : vector<32xf32> to vector<1x32xf32>
    %262 = arith.addf %257, %261 : vector<1x32xf32>
    %263 = vector.extract_strided_slice %82 {offsets = [6, 0], sizes = [1, 32], strides = [1, 1]} : vector<8x32xf32> to vector<1x32xf32>
    %264 = vector.extract_strided_slice %84 {offsets = [6, 0], sizes = [1, 32], strides = [1, 1]} : vector<8x32xf32> to vector<1x32xf32>
    %265 = vector.extract_strided_slice %86 {offsets = [6, 0], sizes = [1, 4], strides = [1, 1]} : vector<8x4xf32> to vector<1x4xf32>
    %266 = vector.extract_strided_slice %88 {offsets = [6, 0], sizes = [1, 4], strides = [1, 1]} : vector<8x4xf32> to vector<1x4xf32>
    %267 = vector.extract_strided_slice %265 {offsets = [0, 0], sizes = [1, 1], strides = [1, 1]} : vector<1x4xf32> to vector<1x1xf32>
    %268 = vector.extract_strided_slice %265 {offsets = [0, 1], sizes = [1, 1], strides = [1, 1]} : vector<1x4xf32> to vector<1x1xf32>
    %269 = vector.extract_strided_slice %265 {offsets = [0, 2], sizes = [1, 1], strides = [1, 1]} : vector<1x4xf32> to vector<1x1xf32>
    %270 = vector.extract_strided_slice %265 {offsets = [0, 3], sizes = [1, 1], strides = [1, 1]} : vector<1x4xf32> to vector<1x1xf32>
    %271 = tpu.concatenate %267, %268, %269, %270 in 0 : vector<1x1xf32>, vector<1x1xf32>, vector<1x1xf32>, vector<1x1xf32> -> vector<4x1xf32>
    %272 = vector.extract_strided_slice %266 {offsets = [0, 0], sizes = [1, 1], strides = [1, 1]} : vector<1x4xf32> to vector<1x1xf32>
    %273 = vector.extract_strided_slice %266 {offsets = [0, 1], sizes = [1, 1], strides = [1, 1]} : vector<1x4xf32> to vector<1x1xf32>
    %274 = vector.extract_strided_slice %266 {offsets = [0, 2], sizes = [1, 1], strides = [1, 1]} : vector<1x4xf32> to vector<1x1xf32>
    %275 = vector.extract_strided_slice %266 {offsets = [0, 3], sizes = [1, 1], strides = [1, 1]} : vector<1x4xf32> to vector<1x1xf32>
    %276 = tpu.concatenate %272, %273, %274, %275 in 0 : vector<1x1xf32>, vector<1x1xf32>, vector<1x1xf32>, vector<1x1xf32> -> vector<4x1xf32>
    %277 = vector.broadcast %263 : vector<1x32xf32> to vector<4x32xf32>
    %278 = arith.mulf %277, %76 : vector<4x32xf32>
    %279 = math.exp %278 : vector<4x32xf32>
    %280 = arith.mulf %279, %256 : vector<4x32xf32>
    %281 = arith.mulf %263, %264 : vector<1x32xf32>
    %282 = vector.broadcast %281 : vector<1x32xf32> to vector<4x32xf32>
    %283 = vector.broadcast %271 : vector<4x1xf32> to vector<4x32xf32>
    %284 = arith.mulf %282, %283 : vector<4x32xf32>
    %285 = arith.addf %280, %284 : vector<4x32xf32>
    %286 = arith.mulf %77, %264 : vector<1x32xf32>
    %287 = vector.broadcast %276 : vector<4x1xf32> to vector<4x32xf32>
    %288 = arith.mulf %285, %287 : vector<4x32xf32>
    %cst_51 = arith.constant dense<0.000000e+00> : vector<32xf32>
    %289 = vector.multi_reduction <add>, %288, %cst_51 [0] : vector<4x32xf32> to vector<32xf32>
    %290 = vector.shape_cast %289 : vector<32xf32> to vector<1x32xf32>
    %291 = arith.addf %286, %290 : vector<1x32xf32>
    %292 = vector.extract_strided_slice %82 {offsets = [7, 0], sizes = [1, 32], strides = [1, 1]} : vector<8x32xf32> to vector<1x32xf32>
    %293 = vector.extract_strided_slice %84 {offsets = [7, 0], sizes = [1, 32], strides = [1, 1]} : vector<8x32xf32> to vector<1x32xf32>
    %294 = vector.extract_strided_slice %86 {offsets = [7, 0], sizes = [1, 4], strides = [1, 1]} : vector<8x4xf32> to vector<1x4xf32>
    %295 = vector.extract_strided_slice %88 {offsets = [7, 0], sizes = [1, 4], strides = [1, 1]} : vector<8x4xf32> to vector<1x4xf32>
    %296 = vector.extract_strided_slice %294 {offsets = [0, 0], sizes = [1, 1], strides = [1, 1]} : vector<1x4xf32> to vector<1x1xf32>
    %297 = vector.extract_strided_slice %294 {offsets = [0, 1], sizes = [1, 1], strides = [1, 1]} : vector<1x4xf32> to vector<1x1xf32>
    %298 = vector.extract_strided_slice %294 {offsets = [0, 2], sizes = [1, 1], strides = [1, 1]} : vector<1x4xf32> to vector<1x1xf32>
    %299 = vector.extract_strided_slice %294 {offsets = [0, 3], sizes = [1, 1], strides = [1, 1]} : vector<1x4xf32> to vector<1x1xf32>
    %300 = tpu.concatenate %296, %297, %298, %299 in 0 : vector<1x1xf32>, vector<1x1xf32>, vector<1x1xf32>, vector<1x1xf32> -> vector<4x1xf32>
    %301 = vector.extract_strided_slice %295 {offsets = [0, 0], sizes = [1, 1], strides = [1, 1]} : vector<1x4xf32> to vector<1x1xf32>
    %302 = vector.extract_strided_slice %295 {offsets = [0, 1], sizes = [1, 1], strides = [1, 1]} : vector<1x4xf32> to vector<1x1xf32>
    %303 = vector.extract_strided_slice %295 {offsets = [0, 2], sizes = [1, 1], strides = [1, 1]} : vector<1x4xf32> to vector<1x1xf32>
    %304 = vector.extract_strided_slice %295 {offsets = [0, 3], sizes = [1, 1], strides = [1, 1]} : vector<1x4xf32> to vector<1x1xf32>
    %305 = tpu.concatenate %301, %302, %303, %304 in 0 : vector<1x1xf32>, vector<1x1xf32>, vector<1x1xf32>, vector<1x1xf32> -> vector<4x1xf32>
    %306 = vector.broadcast %292 : vector<1x32xf32> to vector<4x32xf32>
    %307 = arith.mulf %306, %76 : vector<4x32xf32>
    %308 = math.exp %307 : vector<4x32xf32>
    %309 = arith.mulf %308, %285 : vector<4x32xf32>
    %310 = arith.mulf %292, %293 : vector<1x32xf32>
    %311 = vector.broadcast %310 : vector<1x32xf32> to vector<4x32xf32>
    %312 = vector.broadcast %300 : vector<4x1xf32> to vector<4x32xf32>
    %313 = arith.mulf %311, %312 : vector<4x32xf32>
    %314 = arith.addf %309, %313 : vector<4x32xf32>
    %315 = arith.mulf %77, %293 : vector<1x32xf32>
    %316 = vector.broadcast %305 : vector<4x1xf32> to vector<4x32xf32>
    %317 = arith.mulf %314, %316 : vector<4x32xf32>
    %cst_52 = arith.constant dense<0.000000e+00> : vector<32xf32>
    %318 = vector.multi_reduction <add>, %317, %cst_52 [0] : vector<4x32xf32> to vector<32xf32>
    %319 = vector.shape_cast %318 : vector<32xf32> to vector<1x32xf32>
    %320 = arith.addf %315, %319 : vector<1x32xf32>
    %321 = tpu.concatenate %117, %146, %175, %204, %233, %262, %291, %320 in 0 : vector<1x32xf32>, vector<1x32xf32>, vector<1x32xf32>, vector<1x32xf32>, vector<1x32xf32>, vector<1x32xf32>, vector<1x32xf32>, vector<1x32xf32> -> vector<8x32xf32>
    %322 = arith.index_cast %80 : i32 to index
    %c0_53 = arith.constant 0 : index
    %323 = vector.load %arg16[%322, %c0_53] : memref<8x32xf32, #tpu.memory_space<vmem>>, vector<8x32xf32>
    tpu.vector_store %arg16[%322, %c0_53], %321 {strides = array<i32>} : memref<8x32xf32, #tpu.memory_space<vmem>>, vector<8x32xf32>,
    %c1_i32_54 = arith.constant 1 : i32
    %c0_55 = arith.constant 0 : index
    %c0_56 = arith.constant 0 : index
    %324 = vector.load %arg16[%c0_55, %c0_56] : memref<8x32xf32, #tpu.memory_space<vmem>>, vector<8x32xf32>
    %325 = arith.negf %5 : vector<8x32xf32>
    %326 = math.exp %325 : vector<8x32xf32>
    %cst_57 = arith.constant 1.000000e+00 : f32
    %327 = vector.broadcast %cst_57 : f32 to vector<8x32xf32>
    %328 = arith.addf %327, %326 : vector<8x32xf32>
    %329 = arith.divf %327, %328 : vector<8x32xf32>
    %330 = arith.mulf %5, %329 : vector<8x32xf32>
    %331 = arith.mulf %324, %330 : vector<8x32xf32>
    %c0_58 = arith.constant 0 : index
    %c0_59 = arith.constant 0 : index
    %332 = vector.load %arg10[%c0_58, %c0_59] : memref<32x128xf32, #tpu.memory_space<vmem>>, vector<32x128xf32>
    %cst_60 = arith.constant dense<0.000000e+00> : vector<8x128xf32>
    %333 = tpu.matmul %331, %332, %cst_60 {dimension_numbers = #tpu.dot_dimension_numbers<[1], [0], [0], [1], [0, 0, 1, 1], [], []>} : vector<8x32xf32>, vector<32x128xf32>, vector<8x128xf32> -> vector<8x128xf32>
    %c0_61 = arith.constant 0 : index
    %c0_62 = arith.constant 0 : index
    %c0_63 = arith.constant 0 : index
    %334 = vector.load %arg11[%c0_61, %c0_62, %c0_63] : memref<1x8x128xf32, #tpu.memory_space<vmem>>, vector<1x8x128xf32>
    %335 = vector.shape_cast %334 : vector<1x8x128xf32> to vector<8x128xf32>
    %336 = vector.shape_cast %333 : vector<8x128xf32> to vector<1x8x128xf32>
    tpu.vector_store %arg11[%c0_61, %c0_62, %c0_63], %336 {strides = array<i32>} : memref<1x8x128xf32, #tpu.memory_space<vmem>>, vector<1x8x128xf32>,
    return
  }
  func.func @transform_0(%arg0: i32) -> (i32, i32, i32) {
    %c0_i32 = arith.constant 0 : i32
    %c0_i32_0 = arith.constant 0 : i32
    %c0_i32_1 = arith.constant 0 : i32
    return %arg0, %c0_i32, %c0_i32_0 : i32, i32, i32
  }
  func.func @transform_1(%arg0: i32) -> (i32, i32) {
    %c0_i32 = arith.constant 0 : i32
    %c0_i32_0 = arith.constant 0 : i32
    %c0_i32_1 = arith.constant 0 : i32
    return %c0_i32, %c0_i32_0 : i32, i32
  }
  func.func @transform_2(%arg0: i32) -> (i32, i32) {
    %c0_i32 = arith.constant 0 : i32
    %c0_i32_0 = arith.constant 0 : i32
    %c0_i32_1 = arith.constant 0 : i32
    return %c0_i32, %c0_i32_0 : i32, i32
  }
  func.func @transform_3(%arg0: i32) -> (i32, i32) {
    %c0_i32 = arith.constant 0 : i32
    %c0_i32_0 = arith.constant 0 : i32
    %c0_i32_1 = arith.constant 0 : i32
    return %c0_i32, %c0_i32_0 : i32, i32
  }
  func.func @transform_4(%arg0: i32) -> (i32, i32) {
    %c0_i32 = arith.constant 0 : i32
    %c0_i32_0 = arith.constant 0 : i32
    %c0_i32_1 = arith.constant 0 : i32
    return %c0_i32, %c0_i32_0 : i32, i32
  }
  func.func @transform_5(%arg0: i32) -> (i32, i32) {
    %c0_i32 = arith.constant 0 : i32
    %c0_i32_0 = arith.constant 0 : i32
    %c0_i32_1 = arith.constant 0 : i32
    return %c0_i32, %c0_i32_0 : i32, i32
  }
  func.func @transform_6(%arg0: i32) -> (i32, i32) {
    %c0_i32 = arith.constant 0 : i32
    %c0_i32_0 = arith.constant 0 : i32
    %c0_i32_1 = arith.constant 0 : i32
    return %c0_i32, %c0_i32_0 : i32, i32
  }
  func.func @transform_7(%arg0: i32) -> (i32, i32) {
    %c0_i32 = arith.constant 0 : i32
    %c0_i32_0 = arith.constant 0 : i32
    %c0_i32_1 = arith.constant 0 : i32
    return %c0_i32, %c0_i32_0 : i32, i32
  }
  func.func @transform_8(%arg0: i32) -> (i32, i32) {
    %c0_i32 = arith.constant 0 : i32
    %c0_i32_0 = arith.constant 0 : i32
    %c0_i32_1 = arith.constant 0 : i32
    return %c0_i32, %c0_i32_0 : i32, i32
  }
  func.func @transform_9(%arg0: i32) -> (i32, i32) {
    %c0_i32 = arith.constant 0 : i32
    %c0_i32_0 = arith.constant 0 : i32
    %c0_i32_1 = arith.constant 0 : i32
    return %c0_i32, %c0_i32_0 : i32, i32
  }
  func.func @transform_10(%arg0: i32) -> (i32, i32, i32) {
    %c0_i32 = arith.constant 0 : i32
    %c0_i32_0 = arith.constant 0 : i32
    %c0_i32_1 = arith.constant 0 : i32
    return %arg0, %c0_i32, %c0_i32_0 : i32, i32, i32
  }
}

</mosaic_0001>

<llo_original>
// kernel: tpu_custom_call.1
$region0: #{tpu_custom_call.1}
  #allocation0 [shape = 'u32[]', space=smem, size = 0x4, offset = 0x4, fixed_abs, tag = 'smem constant byte address 0x4 - core index']
  #allocation1 [shape = 'u32[144,128]{1,0:T(1,128)}', space=vmem, size = 0x12000, scoped, tag = 'internal scratch']
  #allocation2 [shape = 'f32[8,32]{1,0:T(8,128)}', space=vmem, size = 0x1000, scoped, tag = 'scratch operand']
  #allocation3 [shape = 'f32[8,32]{1,0:T(8,128)}', space=vmem, size = 0x1000, scoped, tag = 'scratch operand']
  #allocation4 [shape = 'f32[8,4]{1,0:T(8,128)}', space=vmem, size = 0x1000, scoped, tag = 'scratch operand']
  #allocation5 [shape = 'f32[8,4]{1,0:T(8,128)}', space=vmem, size = 0x1000, scoped, tag = 'scratch operand']
  #allocation6 [shape = 'f32[8,32]{1,0:T(8,128)}', space=vmem, size = 0x1000, scoped, tag = 'scratch operand']
  %s0 = inlined_call_operand.vmem [shape: f32[2,8,128], index: 0, kind: input, shape index: {}]
  %s1 = inlined_call_operand.vmem [shape: f32[128,64], index: 1, kind: input, shape index: {}]
  %s2 = inlined_call_operand.vmem [shape: f32[4,32], index: 2, kind: input, shape index: {}]
  %s3 = inlined_call_operand.vmem [shape: f32[1,32], index: 3, kind: input, shape index: {}]
  %s4 = inlined_call_operand.vmem [shape: f32[32,9], index: 4, kind: input, shape index: {}]
  %s5 = inlined_call_operand.vmem [shape: f32[1,32], index: 5, kind: input, shape index: {}]
  %s6 = inlined_call_operand.vmem [shape: f32[1,32], index: 6, kind: input, shape index: {}]
  %s7 = inlined_call_operand.vmem [shape: f32[4,32], index: 7, kind: input, shape index: {}]
  %s8 = inlined_call_operand.vmem [shape: f32[1,32], index: 8, kind: input, shape index: {}]
  %s9 = inlined_call_operand.vmem [shape: f32[32,128], index: 9, kind: input, shape index: {}]
  %s10 = inlined_call_operand.hbm [shape: f32[2,8,128], index: 10, kind: output, shape index: {}]
  %s11 = sld [smem:[#allocation0]]
  $region73: #{tpu_custom_call.1} parent=0
    _
  %s13 = ssub.s32 1, %s11
  %s14 = scalar_select 0, %s13, %s11
  $region1: #{tpu_custom_call.1} parent=0
    #allocation7 [shape = 'u8[8192]{0}', space=vmem, size = 0x2000, scoped, tag = 'output window, operand 0']
    #allocation8 [shape = 's32[2]{0}', space=sflag, size = 0x8, scoped, tag = 'scoped memory for tpu_custom_call.1']
    %15 = vsyncpa [#allocation8], 0
    %s16 = scalar_lea.sflag [#allocation8], 1
    %17 = vsyncpa %s16, 0
    loop: start=0, step=1, limit=4
    $region2: #{tpu_custom_call.1} parent=1 // loop_pre_header
      _
    $region3: #{tpu_custom_call.1} parent=1 // loop_header
      %s19 = sphi 0, %s23
      %p20 = scmp.ge.s32.totalorder %s19, 4
      %s29 = sphi 0, %s31
      %s32 = sphi 0, %s29
      %s33 = sphi 0, %s32
      %s49 = sphi 0, %s33
      %s53 = sphi 0, %s53
      %s55 = sphi 0, %s53
      %s56 = sphi 0, %s55
      %s70 = sphi 0, %s56
      %s74 = sphi 0, %s74
      %s76 = sphi 0, %s74
      %s77 = sphi 0, %s76
      %s91 = sphi 0, %s77
      %s95 = sphi 0, %s95
      %s97 = sphi 0, %s95
      %s98 = sphi 0, %s97
      %s112 = sphi 0, %s98
      %s116 = sphi 0, %s116
      %s118 = sphi 0, %s116
      %s119 = sphi 0, %s118
      %s133 = sphi 0, %s119
      %s137 = sphi 0, %s137
      %s139 = sphi 0, %s137
      %s140 = sphi 0, %s139
      %s154 = sphi 0, %s140
      %s158 = sphi 0, %s158
      %s160 = sphi 0, %s158
      %s161 = sphi 0, %s160
      %s175 = sphi 0, %s161
      %s179 = sphi 0, %s179
      %s181 = sphi 0, %s179
      %s182 = sphi 0, %s181
      %s196 = sphi 0, %s182
      %s200 = sphi 0, %s200
      %s202 = sphi 0, %s200
      %s203 = sphi 0, %s202
      %s217 = sphi 0, %s203
      %s221 = sphi 0, %s221
      %s223 = sphi 0, %s221
      %s224 = sphi 0, %s223
      %s238 = sphi 0, %s224
      %s244 = sphi 0, %s246
      %s247 = sphi 0, %s244
      %s248 = sphi 0, %s247
      %s264 = sphi 0, %s248
    $region4: #{tpu_custom_call.1} parent=1 // loop_header_branch
      %22 = sbr.rel (%p20) target = $region8
    $region5: #{tpu_custom_call.1} parent=1 // loop_body
      %s24 = ssub.s32 %s19, 1
      %s25 = ssub.s32 %s19, 2
      %s26 = sadd.s32 %s19, 1
      %s27 = ssub.s32 %s19, %s26
      %p28 = scmp.eq.s32.totalorder %s27, 0
      %s30 = sadd.s32 %s29, 1
      %s31 = scalar_select %p28, %s29, %s30
      %p34 = pneg %p28
      %p35 = scmp.eq.s32.totalorder %s19, 1
      %p36 = por %p34, %p35
      %p37 = scmp.ne.s32.totalorder %s29, %s32
      %p38 = scmp.eq.s32.totalorder %s19, 0
      %p39 = por %p37, %p38
      %p40 = scmp.ne.s32.totalorder %s29, %s32
      %p41 = scmp.eq.s32.totalorder %s24, 1
      %p42 = por %p40, %p41
      %p43 = scmp.ne.s32.totalorder %s32, %s33
      %p44 = scmp.eq.s32.totalorder %s24, 0
      %p45 = por %p43, %p44
      %p46 = scmp.ne.s32.totalorder %s32, %s33
      %p47 = scmp.eq.s32.totalorder %s25, 1
      %p48 = por %p46, %p47
      %p50 = scmp.ne.s32.totalorder %s33, %s49
      %p51 = scmp.eq.s32.totalorder %s25, 0
      %p52 = por %p50, %p51
      %s54 = sadd.s32 %s53, 1
      %p57 = scmp.eq.s32.totalorder %s19, 1
      %p58 = scmp.ne.s32.totalorder %s53, %s55
      %p59 = scmp.eq.s32.totalorder %s19, 0
      %p60 = por %p58, %p59
      %p61 = scmp.ne.s32.totalorder %s53, %s55
      %p62 = scmp.eq.s32.totalorder %s24, 1
      %p63 = por %p61, %p62
      %p64 = scmp.ne.s32.totalorder %s55, %s56
      %p65 = scmp.eq.s32.totalorder %s24, 0
      %p66 = por %p64, %p65
      %p67 = scmp.ne.s32.totalorder %s55, %s56
      %p68 = scmp.eq.s32.totalorder %s25, 1
      %p69 = por %p67, %p68
      %p71 = scmp.ne.s32.totalorder %s56, %s70
      %p72 = scmp.eq.s32.totalorder %s25, 0
      %p73 = por %p71, %p72
      %s75 = sadd.s32 %s74, 1
      %p78 = scmp.eq.s32.totalorder %s19, 1
      %p79 = scmp.ne.s32.totalorder %s74, %s76
      %p80 = scmp.eq.s32.totalorder %s19, 0
      %p81 = por %p79, %p80
      %p82 = scmp.ne.s32.totalorder %s74, %s76
      %p83 = scmp.eq.s32.totalorder %s24, 1
      %p84 = por %p82, %p83
      %p85 = scmp.ne.s32.totalorder %s76, %s77
      %p86 = scmp.eq.s32.totalorder %s24, 0
      %p87 = por %p85, %p86
      %p88 = scmp.ne.s32.totalorder %s76, %s77
      %p89 = scmp.eq.s32.totalorder %s25, 1
      %p90 = por %p88, %p89
      %p92 = scmp.ne.s32.totalorder %s77, %s91
      %p93 = scmp.eq.s32.totalorder %s25, 0
      %p94 = por %p92, %p93
      %s96 = sadd.s32 %s95, 1
      %p99 = scmp.eq.s32.totalorder %s19, 1
      %p100 = scmp.ne.s32.totalorder %s95, %s97
      %p101 = scmp.eq.s32.totalorder %s19, 0
      %p102 = por %p100, %p101
      %p103 = scmp.ne.s32.totalorder %s95, %s97
      %p104 = scmp.eq.s32.totalorder %s24, 1
      %p105 = por %p103, %p104
      %p106 = scmp.ne.s32.totalorder %s97, %s98
      %p107 = scmp.eq.s32.totalorder %s24, 0
      %p108 = por %p106, %p107
      %p109 = scmp.ne.s32.totalorder %s97, %s98
      %p110 = scmp.eq.s32.totalorder %s25, 1
      %p111 = por %p109, %p110
      %p113 = scmp.ne.s32.totalorder %s98, %s112
      %p114 = scmp.eq.s32.totalorder %s25, 0
      %p115 = por %p113, %p114
      %s117 = sadd.s32 %s116, 1
      %p120 = scmp.eq.s32.totalorder %s19, 1
      %p121 = scmp.ne.s32.totalorder %s116, %s118
      %p122 = scmp.eq.s32.totalorder %s19, 0
      %p123 = por %p121, %p122
      %p124 = scmp.ne.s32.totalorder %s116, %s118
      %p125 = scmp.eq.s32.totalorder %s24, 1
      %p126 = por %p124, %p125
      %p127 = scmp.ne.s32.totalorder %s118, %s119
      %p128 = scmp.eq.s32.totalorder %s24, 0
      %p129 = por %p127, %p128
      %p130 = scmp.ne.s32.totalorder %s118, %s119
      %p131 = scmp.eq.s32.totalorder %s25, 1
      %p132 = por %p130, %p131
      %p134 = scmp.ne.s32.totalorder %s119, %s133
      %p135 = scmp.eq.s32.totalorder %s25, 0
      %p136 = por %p134, %p135
      %s138 = sadd.s32 %s137, 1
      %p141 = scmp.eq.s32.totalorder %s19, 1
      %p142 = scmp.ne.s32.totalorder %s137, %s139
      %p143 = scmp.eq.s32.totalorder %s19, 0
      %p144 = por %p142, %p143
      %p145 = scmp.ne.s32.totalorder %s137, %s139
      %p146 = scmp.eq.s32.totalorder %s24, 1
      %p147 = por %p145, %p146
      %p148 = scmp.ne.s32.totalorder %s139, %s140
      %p149 = scmp.eq.s32.totalorder %s24, 0
      %p150 = por %p148, %p149
      %p151 = scmp.ne.s32.totalorder %s139, %s140
      %p152 = scmp.eq.s32.totalorder %s25, 1
      %p153 = por %p151, %p152
      %p155 = scmp.ne.s32.totalorder %s140, %s154
      %p156 = scmp.eq.s32.totalorder %s25, 0
      %p157 = por %p155, %p156
      %s159 = sadd.s32 %s158, 1
      %p162 = scmp.eq.s32.totalorder %s19, 1
      %p163 = scmp.ne.s32.totalorder %s158, %s160
      %p164 = scmp.eq.s32.totalorder %s19, 0
      %p165 = por %p163, %p164
      %p166 = scmp.ne.s32.totalorder %s158, %s160
      %p167 = scmp.eq.s32.totalorder %s24, 1
      %p168 = por %p166, %p167
      %p169 = scmp.ne.s32.totalorder %s160, %s161
      %p170 = scmp.eq.s32.totalorder %s24, 0
      %p171 = por %p169, %p170
      %p172 = scmp.ne.s32.totalorder %s160, %s161
      %p173 = scmp.eq.s32.totalorder %s25, 1
      %p174 = por %p172, %p173
      %p176 = scmp.ne.s32.totalorder %s161, %s175
      %p177 = scmp.eq.s32.totalorder %s25, 0
      %p178 = por %p176, %p177
      %s180 = sadd.s32 %s179, 1
      %p183 = scmp.eq.s32.totalorder %s19, 1
      %p184 = scmp.ne.s32.totalorder %s179, %s181
      %p185 = scmp.eq.s32.totalorder %s19, 0
      %p186 = por %p184, %p185
      %p187 = scmp.ne.s32.totalorder %s179, %s181
      %p188 = scmp.eq.s32.totalorder %s24, 1
      %p189 = por %p187, %p188
      %p190 = scmp.ne.s32.totalorder %s181, %s182
      %p191 = scmp.eq.s32.totalorder %s24, 0
      %p192 = por %p190, %p191
      %p193 = scmp.ne.s32.totalorder %s181, %s182
      %p194 = scmp.eq.s32.totalorder %s25, 1
      %p195 = por %p193, %p194
      %p197 = scmp.ne.s32.totalorder %s182, %s196
      %p198 = scmp.eq.s32.totalorder %s25, 0
      %p199 = por %p197, %p198
      %s201 = sadd.s32 %s200, 1
      %p204 = scmp.eq.s32.totalorder %s19, 1
      %p205 = scmp.ne.s32.totalorder %s200, %s202
      %p206 = scmp.eq.s32.totalorder %s19, 0
      %p207 = por %p205, %p206
      %p208 = scmp.ne.s32.totalorder %s200, %s202
      %p209 = scmp.eq.s32.totalorder %s24, 1
      %p210 = por %p208, %p209
      %p211 = scmp.ne.s32.totalorder %s202, %s203
      %p212 = scmp.eq.s32.totalorder %s24, 0
      %p213 = por %p211, %p212
      %p214 = scmp.ne.s32.totalorder %s202, %s203
      %p215 = scmp.eq.s32.totalorder %s25, 1
      %p216 = por %p214, %p215
      %p218 = scmp.ne.s32.totalorder %s203, %s217
      %p219 = scmp.eq.s32.totalorder %s25, 0
      %p220 = por %p218, %p219
      %s222 = sadd.s32 %s221, 1
      %p225 = scmp.eq.s32.totalorder %s19, 1
      %p226 = scmp.ne.s32.totalorder %s221, %s223
      %p227 = scmp.eq.s32.totalorder %s19, 0
      %p228 = por %p226, %p227
      %p229 = scmp.ne.s32.totalorder %s221, %s223
      %p230 = scmp.eq.s32.totalorder %s24, 1
      %p231 = por %p229, %p230
      %p232 = scmp.ne.s32.totalorder %s223, %s224
      %p233 = scmp.eq.s32.totalorder %s24, 0
      %p234 = por %p232, %p233
      %p235 = scmp.ne.s32.totalorder %s223, %s224
      %p236 = scmp.eq.s32.totalorder %s25, 1
      %p237 = por %p235, %p236
      %p239 = scmp.ne.s32.totalorder %s224, %s238
      %p240 = scmp.eq.s32.totalorder %s25, 0
      %p241 = por %p239, %p240
      %s242 = ssub.s32 %s19, %s26
      %p243 = scmp.eq.s32.totalorder %s242, 0
      %s245 = sadd.s32 %s244, 1
      %s246 = scalar_select %p243, %s244, %s245
      %p249 = pneg %p243
      %p250 = scmp.eq.s32.totalorder %s19, 1
      %p251 = por %p249, %p250
      %p252 = scmp.ne.s32.totalorder %s244, %s247
      %p253 = scmp.eq.s32.totalorder %s19, 0
      %p254 = por %p252, %p253
      %p255 = scmp.ne.s32.totalorder %s244, %s247
      %p256 = scmp.eq.s32.totalorder %s24, 1
      %p257 = por %p255, %p256
      %p258 = scmp.ne.s32.totalorder %s247, %s248
      %p259 = scmp.eq.s32.totalorder %s24, 0
      %p260 = por %p258, %p259
      %p261 = scmp.ne.s32.totalorder %s247, %s248
      %p262 = scmp.eq.s32.totalorder %s25, 1
      %p263 = por %p261, %p262
      %p265 = scmp.ne.s32.totalorder %s248, %s264
      %p266 = scmp.eq.s32.totalorder %s25, 0
      %p267 = por %p265, %p266
      %p268 = scmp.le.s32.totalorder 1, %s19
      %p269 = scmp.lt.s32.totalorder %s19, 3
      %p270 = pnand %p268, %p269
      %p271 = pneg %p270
      // Predicated region
      $region9: #{tpu_custom_call.1} parent=5 // pred_check
        _
      $region10: #{tpu_custom_call.1} parent=5 // pred_check_branch
        %273 = sbr.rel (%p270) target = $region12
      $region11: #{tpu_custom_call.1} parent=5 // pred_region
        %s274 = ssub.s32 %s19, 1
        // Predicated region
        $region13: #{tpu_custom_call.1} parent=11 // pred_check
          %p275 = pneg %p66
        $region14: #{tpu_custom_call.1} parent=11 // pred_check_branch
          %277 = sbr.rel (%p275) target = $region16
        $region15: #{tpu_custom_call.1} parent=11 // pred_region
          _
        $region16: #{tpu_custom_call.1} parent=11 // pred_fallthru
          _
        // Predicated region
        $region17: #{tpu_custom_call.1} parent=11 // pred_check
          %p278 = pneg %p87
        $region18: #{tpu_custom_call.1} parent=11 // pred_check_branch
          %280 = sbr.rel (%p278) target = $region20
        $region19: #{tpu_custom_call.1} parent=11 // pred_region
          _
        $region20: #{tpu_custom_call.1} parent=11 // pred_fallthru
          _
        // Predicated region
        $region21: #{tpu_custom_call.1} parent=11 // pred_check
          %p281 = pneg %p108
        $region22: #{tpu_custom_call.1} parent=11 // pred_check_branch
          %283 = sbr.rel (%p281) target = $region24
        $region23: #{tpu_custom_call.1} parent=11 // pred_region
          _
        $region24: #{tpu_custom_call.1} parent=11 // pred_fallthru
          _
        // Predicated region
        $region25: #{tpu_custom_call.1} parent=11 // pred_check
          %p284 = pneg %p129
        $region26: #{tpu_custom_call.1} parent=11 // pred_check_branch
          %286 = sbr.rel (%p284) target = $region28
        $region27: #{tpu_custom_call.1} parent=11 // pred_region
          _
        $region28: #{tpu_custom_call.1} parent=11 // pred_fallthru
          _
        // Predicated region
        $region29: #{tpu_custom_call.1} parent=11 // pred_check
          %p287 = pneg %p150
        $region30: #{tpu_custom_call.1} parent=11 // pred_check_branch
          %289 = sbr.rel (%p287) target = $region32
        $region31: #{tpu_custom_call.1} parent=11 // pred_region
          _
        $region32: #{tpu_custom_call.1} parent=11 // pred_fallthru
          _
        // Predicated region
        $region33: #{tpu_custom_call.1} parent=11 // pred_check
          %p290 = pneg %p171
        $region34: #{tpu_custom_call.1} parent=11 // pred_check_branch
          %292 = sbr.rel (%p290) target = $region36
        $region35: #{tpu_custom_call.1} parent=11 // pred_region
          _
        $region36: #{tpu_custom_call.1} parent=11 // pred_fallthru
          _
        // Predicated region
        $region37: #{tpu_custom_call.1} parent=11 // pred_check
          %p293 = pneg %p192
        $region38: #{tpu_custom_call.1} parent=11 // pred_check_branch
          %295 = sbr.rel (%p293) target = $region40
        $region39: #{tpu_custom_call.1} parent=11 // pred_region
          _
        $region40: #{tpu_custom_call.1} parent=11 // pred_fallthru
          _
        // Predicated region
        $region41: #{tpu_custom_call.1} parent=11 // pred_check
          %p296 = pneg %p213
        $region42: #{tpu_custom_call.1} parent=11 // pred_check_branch
          %298 = sbr.rel (%p296) target = $region44
        $region43: #{tpu_custom_call.1} parent=11 // pred_region
          _
        $region44: #{tpu_custom_call.1} parent=11 // pred_fallthru
          _
        // Predicated region
        $region45: #{tpu_custom_call.1} parent=11 // pred_check
          %p299 = pneg %p234
        $region46: #{tpu_custom_call.1} parent=11 // pred_check_branch
          %301 = sbr.rel (%p299) target = $region48
        $region47: #{tpu_custom_call.1} parent=11 // pred_region
          _
        $region48: #{tpu_custom_call.1} parent=11 // pred_fallthru
          _
      $region12: #{tpu_custom_call.1} parent=5 // pred_fallthru
        _
      %p302 = scmp.lt.s32.totalorder %s19, 2
      // Predicated region
      $region49: #{tpu_custom_call.1} parent=5 // pred_check
        %p303 = pneg %p302
      $region50: #{tpu_custom_call.1} parent=5 // pred_check_branch
        %305 = sbr.rel (%p303) target = $region52
      $region51: #{tpu_custom_call.1} parent=5 // pred_region
        // Predicated region
        $region53: #{tpu_custom_call.1} parent=51 // pred_check
          %p306 = pneg %p39
        $region54: #{tpu_custom_call.1} parent=51 // pred_check_branch
          %308 = sbr.rel (%p306) target = $region56
        $region55: #{tpu_custom_call.1} parent=51 // pred_region
          %p309 = scmp.lt.s32.totalorder %s19, 1
          %s310 = scalar_select %p309, %s19, 1
          %s311 = smul.addr %s310, 8
          %s312 = scalar_lea.vmem %s0, %s311
        $region56: #{tpu_custom_call.1} parent=51 // pred_fallthru
          _
      $region52: #{tpu_custom_call.1} parent=5 // pred_fallthru
        _
      %p313 = scmp.le.s32.totalorder 1, %s19
      %p314 = scmp.lt.s32.totalorder %s19, 3
      %p315 = pnand %p313, %p314
      %p316 = pneg %p315
      // Predicated region
      $region57: #{tpu_custom_call.1} parent=5 // pred_check
        _
      $region58: #{tpu_custom_call.1} parent=5 // pred_check_branch
        %318 = sbr.rel (%p315) target = $region60
      $region59: #{tpu_custom_call.1} parent=5 // pred_region
        %s319 = ssub.s32 %s19, 1
        %p320 = scmp.lt.s32.totalorder %s24, 1
        %s321 = scalar_select %p320, %s24, 1
        %s322 = smul.addr %s321, 8
        %s323 = scalar_lea.vmem %s0, %s322
        %p324 = pneg %p45
        %p325 = pneg %p42
        %p326 = pneg %p66
        %p327 = pneg %p63
        %p328 = pneg %p87
        %p329 = pneg %p84
        %p330 = pneg %p108
        %p331 = pneg %p105
        %p332 = pneg %p129
        %p333 = pneg %p126
        %p334 = pneg %p150
        %p335 = pneg %p147
        %p336 = pneg %p171
        %p337 = pneg %p168
        %p338 = pneg %p192
        %p339 = pneg %p189
        %p340 = pneg %p213
        %p341 = pneg %p210
        %p342 = pneg %p234
        %p343 = pneg %p231
        %p344 = pneg %p260
        %p345 = pneg %p257
        %s346 = sand.u32 %s247, 1
        %s347 = scalar_lea.sflag [#allocation8], %s346
        %s348 = sand.u32 %s247, 1
        %s349 = smul.addr %s348, 8
        %s350 = scalar_lea.vmem [#allocation7], %s349
        %p351 = scmp.lt.s32.totalorder %s24, 1
        %s352 = scalar_select %p351, %s24, 1
        %s353 = smul.addr %s352, 8
        %s354 = scalar_lea.vmem %s0, %s353
        %v355 = vld [vmem:[%s354] sm:$0xff]
        %v356 = vld [vmem:[%s1] sm:$0xff]
        %v357 = vld [vmem:[%s1 + $0x8] sm:$0xff]
        %v358 = vld [vmem:[%s1 + $0x10] sm:$0xff]
        %v359 = vld [vmem:[%s1 + $0x18] sm:$0xff]
        %v360 = vld [vmem:[%s1 + $0x20] sm:$0xff]
        %v361 = vld [vmem:[%s1 + $0x28] sm:$0xff]
        %v362 = vld [vmem:[%s1 + $0x30] sm:$0xff]
        %v363 = vld [vmem:[%s1 + $0x38] sm:$0xff]
        %v364 = vld [vmem:[%s1 + $0x40] sm:$0xff]
        %v365 = vld [vmem:[%s1 + $0x48] sm:$0xff]
        %v366 = vld [vmem:[%s1 + $0x50] sm:$0xff]
        %v367 = vld [vmem:[%s1 + $0x58] sm:$0xff]
        %v368 = vld [vmem:[%s1 + $0x60] sm:$0xff]
        %v369 = vld [vmem:[%s1 + $0x68] sm:$0xff]
        %v370 = vld [vmem:[%s1 + $0x70] sm:$0xff]
        %v371 = vld [vmem:[%s1 + $0x78] sm:$0xff]
        %372 = vmatprep.subr.mxu0 0.0
        %373 = vmatpush1.msra.mxu0 %v356
        %374 = vmatprep.subr.mxu0 0.0
        %375 = vmatpush1.msra.mxu0 %v357
        %376 = vmatprep.subr.mxu0 0.0
        %377 = vmatpush1.msra.mxu0 %v358
        %378 = vmatprep.subr.mxu0 0.0
        %379 = vmatpush1.msra.mxu0 %v359
        %380 = vmatprep.subr.mxu0 0.0
        %381 = vmatpush1.msra.mxu0 %v360
        %382 = vmatprep.subr.mxu0 0.0
        %383 = vmatpush1.msra.mxu0 %v361
        %384 = vmatprep.subr.mxu0 0.0
        %385 = vmatpush1.msra.mxu0 %v362
        %386 = vmatprep.subr.mxu0 0.0
        %387 = vmatpush1.msra.mxu0 %v363
        %388 = vmatprep.subr.mxu0 0.0
        %389 = vmatpush1.msra.mxu0 %v364
        %390 = vmatprep.subr.mxu0 0.0
        %391 = vmatpush1.msra.mxu0 %v365
        %392 = vmatprep.subr.mxu0 0.0
        %393 = vmatpush1.msra.mxu0 %v366
        %394 = vmatprep.subr.mxu0 0.0
        %395 = vmatpush1.msra.mxu0 %v367
        %396 = vmatprep.subr.mxu0 0.0
        %397 = vmatpush1.msra.mxu0 %v368
        %398 = vmatprep.subr.mxu0 0.0
        %399 = vmatpush1.msra.mxu0 %v369
        %400 = vmatprep.subr.mxu0 0.0
        %401 = vmatpush1.msra.mxu0 %v370
        %402 = vmatprep.subr.mxu0 0.0
        %403 = vmatpush1.msra.mxu0 %v371
        %404 = vmatprep.subr.mxu0 0.0
        %405 = vmatpush1.msra.mxu0 0.0
        %406 = vmatprep.subr.mxu0 0.0
        %407 = vmatpush1.msra.mxu0 0.0
        %408 = vmatprep.subr.mxu0 0.0
        %409 = vmatpush1.msra.mxu0 0.0
        %410 = vmatprep.subr.mxu0 0.0
        %411 = vmatpush1.msra.mxu0 0.0
        %412 = vmatprep.subr.mxu0 0.0
        %413 = vmatpush1.msra.mxu0 0.0
        %414 = vmatprep.subr.mxu0 0.0
        %415 = vmatpush1.msra.mxu0 0.0
        %416 = vmatprep.subr.mxu0 0.0
        %417 = vmatpush1.msra.mxu0 0.0
        %418 = vmatprep.subr.mxu0 0.0
        %419 = vmatpush1.msra.mxu0 0.0
        %420 = vmatprep.subr.mxu0 0.0
        %421 = vmatpush1.msra.mxu0 0.0
        %422 = vmatprep.subr.mxu0 0.0
        %423 = vmatpush1.msra.mxu0 0.0
        %424 = vmatprep.subr.mxu0 0.0
        %425 = vmatpush1.msra.mxu0 0.0
        %426 = vmatprep.subr.mxu0 0.0
        %427 = vmatpush1.msra.mxu0 0.0
        %428 = vmatprep.subr.mxu0 0.0
        %429 = vmatpush1.msra.mxu0 0.0
        %430 = vmatprep.subr.mxu0 0.0
        %431 = vmatpush1.msra.mxu0 0.0
        %432 = vmatprep.subr.mxu0 0.0
        %433 = vmatpush1.msra.mxu0 0.0
        %434 = vmatprep.subr.mxu0 0.0
        %435 = vmatpush1.msra.mxu0 0.0
        %436 = vmatprep.mubr.f32.mxu0 0.0
        %437 = vmatmul.mubr.f32.gmra.mrb[0].mxu0 %v355
        %v438 = vpop.f32.mrb[0].mxu0
        %v439 = vadd.f32 0.0, %v438
        %v440 = vpop.f32.mrb[0].mxu0
        %441 = vdwg.mxu0
        %v442 = vld [vmem:[%s2] sm:$0xf]
        %v443 = vlaneseq
        %v444 = vshrl.u32 %v443, 7
        %v445 = vld [vmem:[%s3] sm:$0x1]
        %v447 = vlaneseq
        %v448 = vshrl.u32 %v447, 7
        %v449 = vsub.s32 0, %v448
        %v450 = vrot.slane %v445, %v449
        %v452 = vrot.slane %v439, 5
        %vm453 = vcmp.ge.s32.totalorder %v444, 3
        %v454 = vsel %vm453, %v452, 0.0
        %v455 = vlaneseq
        %v456 = vshrl.u32 %v455, 7
        %v457 = vsub.s32 0, %v456
        %v458 = vrot.slane %v442, %v457
        %v459 = vmul.f32 %v454, %v458
        %v460 = vadd.f32 %v450, %v459
        %v461 = vrot.slane %v439, 6
        %vm462 = vcmp.ge.s32.totalorder %v444, 2
        %v463 = vsel %vm462, %v461, 0.0
        %v464 = vlaneseq
        %v465 = vshrl.u32 %v464, 7
        %v466 = vsub.s32 1, %v465
        %v467 = vrot.slane %v442, %v466
        %v468 = vmul.f32 %v463, %v467
        %v469 = vadd.f32 %v460, %v468
        %v470 = vrot.slane %v439, 7
        %vm471 = vcmp.ge.s32.totalorder %v444, 1
        %v472 = vsel %vm471, %v470, 0.0
        %v473 = vlaneseq
        %v474 = vshrl.u32 %v473, 7
        %v475 = vsub.s32 2, %v474
        %v476 = vrot.slane %v442, %v475
        %v477 = vmul.f32 %v472, %v476
        %v478 = vadd.f32 %v469, %v477
        %vm479 = vcmp.ge.s32.totalorder %v444, 0
        %v480 = vsel %vm479, %v439, 0.0
        %v481 = vlaneseq
        %v482 = vshrl.u32 %v481, 7
        %v483 = vsub.s32 3, %v482
        %v484 = vrot.slane %v442, %v483
        %v485 = vmul.f32 %v480, %v484
        %v486 = vadd.f32 %v478, %v485
        %v487 = vxor.u32 %v486, 2147483648
        %v488 = vmul.f32 %v487, 1.442695
        %v489 = vpow.pop %v488
        %v490 = vadd.f32 %v489, 1.0
        %v491 = vrcp.pop %v490
        %v492 = vmul.f32 1.0, %v491
        %v493 = vmul.f32 %v486, %v492
        %vm494 = vcmask 261120
        %495 = vst.msk [vmem:[#allocation2] sm:$0xff] %vm494, %v493
        %v496 = vld [vmem:[%s4] sm:$0xff]
        %v497 = vld [vmem:[%s4 + $0x8] sm:$0xff]
        %v498 = vld [vmem:[%s4 + $0x10] sm:$0xff]
        %v499 = vld [vmem:[%s4 + $0x18] sm:$0xff]
        %v501 = vsel %vm494, %v493, 0
        %503 = vmatprep.subr.mxu0 0.0
        %504 = vmatpush1.msra.mxu0 %v496
        %505 = vmatprep.subr.mxu0 0.0
        %506 = vmatpush1.msra.mxu0 %v497
        %507 = vmatprep.subr.mxu0 0.0
        %508 = vmatpush1.msra.mxu0 %v498
        %509 = vmatprep.subr.mxu0 0.0
        %510 = vmatpush1.msra.mxu0 %v499
        %511 = vmatprep.subr.mxu0 0.0
        %512 = vmatpush1.msra.mxu0 0.0
        %513 = vmatprep.subr.mxu0 0.0
        %514 = vmatpush1.msra.mxu0 0.0
        %515 = vmatprep.subr.mxu0 0.0
        %516 = vmatpush1.msra.mxu0 0.0
        %517 = vmatprep.subr.mxu0 0.0
        %518 = vmatpush1.msra.mxu0 0.0
        %519 = vmatprep.subr.mxu0 0.0
        %520 = vmatpush1.msra.mxu0 0.0
        %521 = vmatprep.subr.mxu0 0.0
        %522 = vmatpush1.msra.mxu0 0.0
        %523 = vmatprep.subr.mxu0 0.0
        %524 = vmatpush1.msra.mxu0 0.0
        %525 = vmatprep.subr.mxu0 0.0
        %526 = vmatpush1.msra.mxu0 0.0
        %527 = vmatprep.subr.mxu0 0.0
        %528 = vmatpush1.msra.mxu0 0.0
        %529 = vmatprep.subr.mxu0 0.0
        %530 = vmatpush1.msra.mxu0 0.0
        %531 = vmatprep.subr.mxu0 0.0
        %532 = vmatpush1.msra.mxu0 0.0
        %533 = vmatprep.subr.mxu0 0.0
        %534 = vmatpush1.msra.mxu0 0.0
        %535 = vmatprep.subr.mxu0 0.0
        %536 = vmatpush1.msra.mxu0 0.0
        %537 = vmatprep.subr.mxu0 0.0
        %538 = vmatpush1.msra.mxu0 0.0
        %539 = vmatprep.subr.mxu0 0.0
        %540 = vmatpush1.msra.mxu0 0.0
        %541 = vmatprep.subr.mxu0 0.0
        %542 = vmatpush1.msra.mxu0 0.0
        %543 = vmatprep.subr.mxu0 0.0
        %544 = vmatpush1.msra.mxu0 0.0
        %545 = vmatprep.subr.mxu0 0.0
        %546 = vmatpush1.msra.mxu0 0.0
        %547 = vmatprep.subr.mxu0 0.0
        %548 = vmatpush1.msra.mxu0 0.0
        %549 = vmatprep.subr.mxu0 0.0
        %550 = vmatpush1.msra.mxu0 0.0
        %551 = vmatprep.subr.mxu0 0.0
        %552 = vmatpush1.msra.mxu0 0.0
        %553 = vmatprep.subr.mxu0 0.0
        %554 = vmatpush1.msra.mxu0 0.0
        %555 = vmatprep.subr.mxu0 0.0
        %556 = vmatpush1.msra.mxu0 0.0
        %557 = vmatprep.subr.mxu0 0.0
        %558 = vmatpush1.msra.mxu0 0.0
        %559 = vmatprep.subr.mxu0 0.0
        %560 = vmatpush1.msra.mxu0 0.0
        %561 = vmatprep.subr.mxu0 0.0
        %562 = vmatpush1.msra.mxu0 0.0
        %563 = vmatprep.subr.mxu0 0.0
        %564 = vmatpush1.msra.mxu0 0.0
        %565 = vmatprep.subr.mxu0 0.0
        %566 = vmatpush1.msra.mxu0 0.0
        %567 = vmatprep.mubr.f32.mxu0 0.0
        %568 = vmatmul.mubr.f32.gmra.mrb[0].mxu0 %v501
        %v569 = vpop.f32.mrb[0].mxu0
        %v570 = vadd.f32 0.0, %v569
        %v571 = vpop.f32.mrb[0].mxu0
        %572 = vdwg.mxu0
        %574 = vrot.lane.b32.xlu0 %v570, 127
        %v575 = vpop.permute.xlu0 %574
        %vm577 = vcmask 31744
        %578 = vst.msk [vmem:[#allocation4] sm:$0xff] %vm577, %v575
        %579 = vrot.lane.b32.xlu0 %v570, 123
        %v580 = vpop.permute.xlu0 %579
        %582 = vst.msk [vmem:[#allocation5] sm:$0xff] %vm577, %v580
        %v583 = vld [vmem:[%s5] sm:$0x1]
        %v584 = vld [vmem:[%s6] sm:$0x1]
        %v586 = vlaneseq
        %v587 = vshrl.u32 %v586, 7
        %v588 = vsub.s32 0, %v587
        %v589 = vrot.slane %v584, %v588
        %vm591 = vcmask 7168
        %v592 = vsel %vm591, %v570, 0
        %vm594 = vcmask 1040384
        %v596 = vsel %vm594, %v583, 0
        %598 = vmatprep.subr.mxu0 0.0
        %599 = vmatpush1.msra.mxu0 %v596
        %600 = vmatprep.subr.mxu0 0.0
        %601 = vmatpush1.msra.mxu0 0.0
        %602 = vmatprep.subr.mxu0 0.0
        %603 = vmatpush1.msra.mxu0 0.0
        %604 = vmatprep.subr.mxu0 0.0
        %605 = vmatpush1.msra.mxu0 0.0
        %606 = vmatprep.subr.mxu0 0.0
        %607 = vmatpush1.msra.mxu0 0.0
        %608 = vmatprep.subr.mxu0 0.0
        %609 = vmatpush1.msra.mxu0 0.0
        %610 = vmatprep.subr.mxu0 0.0
        %611 = vmatpush1.msra.mxu0 0.0
        %612 = vmatprep.subr.mxu0 0.0
        %613 = vmatpush1.msra.mxu0 0.0
        %614 = vmatprep.subr.mxu0 0.0
        %615 = vmatpush1.msra.mxu0 0.0
        %616 = vmatprep.subr.mxu0 0.0
        %617 = vmatpush1.msra.mxu0 0.0
        %618 = vmatprep.subr.mxu0 0.0
        %619 = vmatpush1.msra.mxu0 0.0
        %620 = vmatprep.subr.mxu0 0.0
        %621 = vmatpush1.msra.mxu0 0.0
        %622 = vmatprep.subr.mxu0 0.0
        %623 = vmatpush1.msra.mxu0 0.0
        %624 = vmatprep.subr.mxu0 0.0
        %625 = vmatpush1.msra.mxu0 0.0
        %626 = vmatprep.subr.mxu0 0.0
        %627 = vmatpush1.msra.mxu0 0.0
        %628 = vmatprep.subr.mxu0 0.0
        %629 = vmatpush1.msra.mxu0 0.0
        %630 = vmatprep.subr.mxu0 0.0
        %631 = vmatpush1.msra.mxu0 0.0
        %632 = vmatprep.subr.mxu0 0.0
        %633 = vmatpush1.msra.mxu0 0.0
        %634 = vmatprep.subr.mxu0 0.0
        %635 = vmatpush1.msra.mxu0 0.0
        %636 = vmatprep.subr.mxu0 0.0
        %637 = vmatpush1.msra.mxu0 0.0
        %638 = vmatprep.subr.mxu0 0.0
        %639 = vmatpush1.msra.mxu0 0.0
        %640 = vmatprep.subr.mxu0 0.0
        %641 = vmatpush1.msra.mxu0 0.0
        %642 = vmatprep.subr.mxu0 0.0
        %643 = vmatpush1.msra.mxu0 0.0
        %644 = vmatprep.subr.mxu0 0.0
        %645 = vmatpush1.msra.mxu0 0.0
        %646 = vmatprep.subr.mxu0 0.0
        %647 = vmatpush1.msra.mxu0 0.0
        %648 = vmatprep.subr.mxu0 0.0
        %649 = vmatpush1.msra.mxu0 0.0
        %650 = vmatprep.subr.mxu0 0.0
        %651 = vmatpush1.msra.mxu0 0.0
        %652 = vmatprep.subr.mxu0 0.0
        %653 = vmatpush1.msra.mxu0 0.0
        %654 = vmatprep.subr.mxu0 0.0
        %655 = vmatpush1.msra.mxu0 0.0
        %656 = vmatprep.subr.mxu0 0.0
        %657 = vmatpush1.msra.mxu0 0.0
        %658 = vmatprep.subr.mxu0 0.0
        %659 = vmatpush1.msra.mxu0 0.0
        %660 = vmatprep.subr.mxu0 0.0
        %661 = vmatpush1.msra.mxu0 0.0
        %662 = vmatprep.mubr.f32.mxu0 0.0
        %663 = vmatmul.mubr.f32.gmra.mrb[0].mxu0 %v592
        %v664 = vpop.f32.mrb[0].mxu0
        %v665 = vadd.f32 %v589, %v664
        %v666 = vpop.f32.mrb[0].mxu0
        %667 = vdwg.mxu0
        %v668 = vmax.f32 %v665, 0.0
        %v669 = vand.u32 2147483647, %v665
        %v670 = vsub.f32 0.0, %v669
        %v671 = vmul.f32 %v670, 1.442695
        %v672 = vpow.pop %v671
        %v673 = vadd.f32 %v672, 1.0
        %v674 = vlog2.pop %v673
        %v675 = vmul.f32 %v674, 0.6931472
        %v676 = vadd.f32 %v668, %v675
        %677 = vst.msk [vmem:[#allocation3] sm:$0xff] %vm494, %v676
        %v678 = vld [vmem:[%s7] sm:$0xf]
        %v679 = vld [vmem:[%s8] sm:$0x1]
        %v680 = vld [vmem:[#allocation3] sm:$0xff]
        %v681 = vld [vmem:[#allocation2] sm:$0xff]
        %v682 = vld [vmem:[#allocation4] sm:$0xff]
        %v683 = vld [vmem:[#allocation5] sm:$0xff]
        %v685 = vrot.slane %v682, 7
        %686 = vrot.lane.b32.xlu0 %v685, 127
        %v687 = vpop.permute.xlu0 %686
        %v689 = vrot.slane %v682, 6
        %690 = vrot.lane.b32.xlu0 %v689, 126
        %v691 = vpop.permute.xlu0 %690
        %v693 = vrot.slane %v682, 5
        %694 = vrot.lane.b32.xlu0 %v693, 125
        %v695 = vpop.permute.xlu0 %694
        %v697 = vsel %vm594, %v682, %v687
        %vm698 = vcmask 1041408
        %v699 = vsel %vm698, %v697, %v691
        %vm700 = vcmask 1042432
        %v701 = vsel %vm700, %v699, %v695
        %v703 = vrot.slane %v683, 7
        %704 = vrot.lane.b32.xlu0 %v703, 127
        %v705 = vpop.permute.xlu0 %704
        %v707 = vrot.slane %v683, 6
        %708 = vrot.lane.b32.xlu0 %v707, 126
        %v709 = vpop.permute.xlu0 %708
        %v711 = vrot.slane %v683, 5
        %712 = vrot.lane.b32.xlu0 %v711, 125
        %v713 = vpop.permute.xlu0 %712
        %v715 = vsel %vm594, %v683, %v705
        %v716 = vsel %vm698, %v715, %v709
        %v717 = vsel %vm700, %v716, %v713
        %v718 = vlaneseq
        %v719 = vshrl.u32 %v718, 7
        %v720 = vsub.s32 0, %v719
        %v721 = vrot.slane %v680, %v720
        %v722 = vmul.f32 %v721, %v678
        %v723 = vmul.f32 %v722, 1.442695
        %v724 = vpow.pop %v723
        %v725 = vmul.f32 %v724, 0.0
        %v726 = vmul.f32 %v680, %v681
        %v727 = vlaneseq
        %v728 = vshrl.u32 %v727, 7
        %v729 = vsub.s32 0, %v728
        %v730 = vrot.slane %v726, %v729
        %732 = vset.pattern.permute.xlu0 0
        %733 = vperm.xlu0 %732, %v701
        %v734 = vpop.permute.xlu0 %733
        %v736 = vmul.f32 %v730, %v734
        %v737 = vadd.f32 %v725, %v736
        %v738 = vmul.f32 %v679, %v681
        %740 = vset.pattern.permute.xlu0 0
        %741 = vperm.xlu0 %740, %v717
        %v742 = vpop.permute.xlu0 %741
        %v744 = vmul.f32 %v737, %v742
        %vm745 = vcmask 257024
        %v746 = vsel %vm745, %v744, 0.0
        %v747 = vrot.slane %v746, 4
        %v748 = vadd.f32 %v746, %v747
        %v749 = vrot.slane %v748, 2
        %v750 = vadd.f32 %v748, %v749
        %v751 = vrot.slane %v750, 1
        %v752 = vadd.f32 %v750, %v751
        %v753 = vadd.f32 %v738, %v752
        %v754 = vrot.slane %v682, 1
        %756 = vrot.lane.b32.xlu0 %v682, 127
        %v757 = vpop.permute.xlu0 %756
        %759 = vrot.lane.b32.xlu0 %v685, 126
        %v760 = vpop.permute.xlu0 %759
        %762 = vrot.lane.b32.xlu0 %v689, 125
        %v763 = vpop.permute.xlu0 %762
        %v765 = vsel %vm594, %v754, %v757
        %v766 = vsel %vm698, %v765, %v760
        %v767 = vsel %vm700, %v766, %v763
        %v768 = vrot.slane %v683, 1
        %770 = vrot.lane.b32.xlu0 %v683, 127
        %v771 = vpop.permute.xlu0 %770
        %773 = vrot.lane.b32.xlu0 %v703, 126
        %v774 = vpop.permute.xlu0 %773
        %776 = vrot.lane.b32.xlu0 %v707, 125
        %v777 = vpop.permute.xlu0 %776
        %v779 = vsel %vm594, %v768, %v771
        %v780 = vsel %vm698, %v779, %v774
        %v781 = vsel %vm700, %v780, %v777
        %v782 = vlaneseq
        %v783 = vshrl.u32 %v782, 7
        %v784 = vsub.s32 1, %v783
        %v785 = vrot.slane %v680, %v784
        %v786 = vmul.f32 %v785, %v678
        %v787 = vmul.f32 %v786, 1.442695
        %v788 = vpow.pop %v787
        %v789 = vmul.f32 %v788, %v737
        %v790 = vlaneseq
        %v791 = vshrl.u32 %v790, 7
        %v792 = vsub.s32 1, %v791
        %v793 = vrot.slane %v726, %v792
        %795 = vset.pattern.permute.xlu0 0
        %796 = vperm.xlu0 %795, %v767
        %v797 = vpop.permute.xlu0 %796
        %v799 = vmul.f32 %v793, %v797
        %v800 = vadd.f32 %v789, %v799
        %v803 = vunpack.c.l.s4 1966171168
        %v804 = vunpack.c.0.s8 %v803
        %v805 = vlaneseq
        %v806 = vshrl.u32 %v805, 7
        %v807 = vsub.s32 %v804, %v806
        %v808 = vrot.slane %v681, %v807
        %v809 = vcombine.high %v808, %v808
        %v811 = vunpack.c.l.s4 1966171168
        %v812 = vunpack.c.0.s8 %v811
        %v813 = vlaneseq
        %v814 = vshrl.u32 %v813, 7
        %v815 = vsub.s32 %v812, %v814
        %v816 = vrot.slane %v808, %v815
        %v818 = vunpack.c.l.s4 1966171168
        %v819 = vunpack.c.0.s8 %v818
        %v820 = vlaneseq
        %v821 = vshrl.u32 %v820, 7
        %v822 = vsub.s32 %v819, %v821
        %v823 = vrot.slane %v809, %v822
        %v825 = vmul.f32 %v679, %v823
        %827 = vset.pattern.permute.xlu0 0
        %828 = vperm.xlu0 %827, %v781
        %v829 = vpop.permute.xlu0 %828
        %v831 = vmul.f32 %v800, %v829
        %v832 = vsel %vm745, %v831, 0.0
        %v833 = vrot.slane %v832, 4
        %v834 = vadd.f32 %v832, %v833
        %v835 = vrot.slane %v834, 2
        %v836 = vadd.f32 %v834, %v835
        %v837 = vrot.slane %v836, 1
        %v838 = vadd.f32 %v836, %v837
        %v839 = vadd.f32 %v825, %v838
        %v840 = vrot.slane %v682, 2
        %842 = vrot.lane.b32.xlu0 %v754, 127
        %v843 = vpop.permute.xlu0 %842
        %845 = vrot.lane.b32.xlu0 %v682, 126
        %v846 = vpop.permute.xlu0 %845
        %848 = vrot.lane.b32.xlu0 %v685, 125
        %v849 = vpop.permute.xlu0 %848
        %v851 = vsel %vm594, %v840, %v843
        %v852 = vsel %vm698, %v851, %v846
        %v853 = vsel %vm700, %v852, %v849
        %v854 = vrot.slane %v683, 2
        %856 = vrot.lane.b32.xlu0 %v768, 127
        %v857 = vpop.permute.xlu0 %856
        %859 = vrot.lane.b32.xlu0 %v683, 126
        %v860 = vpop.permute.xlu0 %859
        %862 = vrot.lane.b32.xlu0 %v703, 125
        %v863 = vpop.permute.xlu0 %862
        %v865 = vsel %vm594, %v854, %v857
        %v866 = vsel %vm698, %v865, %v860
        %v867 = vsel %vm700, %v866, %v863
        %v868 = vlaneseq
        %v869 = vshrl.u32 %v868, 7
        %v870 = vsub.s32 2, %v869
        %v871 = vrot.slane %v680, %v870
        %v872 = vmul.f32 %v871, %v678
        %v873 = vmul.f32 %v872, 1.442695
        %v874 = vpow.pop %v873
        %v875 = vmul.f32 %v874, %v800
        %v876 = vlaneseq
        %v877 = vshrl.u32 %v876, 7
        %v878 = vsub.s32 2, %v877
        %v879 = vrot.slane %v726, %v878
        %881 = vset.pattern.permute.xlu0 0
        %882 = vperm.xlu0 %881, %v853
        %v883 = vpop.permute.xlu0 %882
        %v885 = vmul.f32 %v879, %v883
        %v886 = vadd.f32 %v875, %v885
        %v887 = vcombine.high %v816, %v816
        %v889 = vmul.f32 %v679, %v887
        %891 = vset.pattern.permute.xlu0 0
        %892 = vperm.xlu0 %891, %v867
        %v893 = vpop.permute.xlu0 %892
        %v895 = vmul.f32 %v886, %v893
        %v896 = vsel %vm745, %v895, 0.0
        %v897 = vrot.slane %v896, 4
        %v898 = vadd.f32 %v896, %v897
        %v899 = vrot.slane %v898, 2
        %v900 = vadd.f32 %v898, %v899
        %v901 = vrot.slane %v900, 1
        %v902 = vadd.f32 %v900, %v901
        %v903 = vadd.f32 %v889, %v902
        %v904 = vrot.slane %v682, 3
        %906 = vrot.lane.b32.xlu0 %v840, 127
        %v907 = vpop.permute.xlu0 %906
        %909 = vrot.lane.b32.xlu0 %v754, 126
        %v910 = vpop.permute.xlu0 %909
        %912 = vrot.lane.b32.xlu0 %v682, 125
        %v913 = vpop.permute.xlu0 %912
        %v915 = vsel %vm594, %v904, %v907
        %v916 = vsel %vm698, %v915, %v910
        %v917 = vsel %vm700, %v916, %v913
        %v918 = vrot.slane %v683, 3
        %920 = vrot.lane.b32.xlu0 %v854, 127
        %v921 = vpop.permute.xlu0 %920
        %923 = vrot.lane.b32.xlu0 %v768, 126
        %v924 = vpop.permute.xlu0 %923
        %926 = vrot.lane.b32.xlu0 %v683, 125
        %v927 = vpop.permute.xlu0 %926
        %v929 = vsel %vm594, %v918, %v921
        %v930 = vsel %vm698, %v929, %v924
        %v931 = vsel %vm700, %v930, %v927
        %v932 = vlaneseq
        %v933 = vshrl.u32 %v932, 7
        %v934 = vsub.s32 3, %v933
        %v935 = vrot.slane %v680, %v934
        %v936 = vmul.f32 %v935, %v678
        %v937 = vmul.f32 %v936, 1.442695
        %v938 = vpow.pop %v937
        %v939 = vmul.f32 %v938, %v886
        %v940 = vlaneseq
        %v941 = vshrl.u32 %v940, 7
        %v942 = vsub.s32 3, %v941
        %v943 = vrot.slane %v726, %v942
        %945 = vset.pattern.permute.xlu0 0
        %946 = vperm.xlu0 %945, %v917
        %v947 = vpop.permute.xlu0 %946
        %v949 = vmul.f32 %v943, %v947
        %v950 = vadd.f32 %v939, %v949
        %v951 = vcombine.high %v823, %v823
        %v953 = vmul.f32 %v679, %v951
        %955 = vset.pattern.permute.xlu0 0
        %956 = vperm.xlu0 %955, %v931
        %v957 = vpop.permute.xlu0 %956
        %v959 = vmul.f32 %v950, %v957
        %v960 = vsel %vm745, %v959, 0.0
        %v961 = vrot.slane %v960, 4
        %v962 = vadd.f32 %v960, %v961
        %v963 = vrot.slane %v962, 2
        %v964 = vadd.f32 %v962, %v963
        %v965 = vrot.slane %v964, 1
        %v966 = vadd.f32 %v964, %v965
        %v967 = vadd.f32 %v953, %v966
        %v968 = vrot.slane %v682, 4
        %970 = vrot.lane.b32.xlu0 %v904, 127
        %v971 = vpop.permute.xlu0 %970
        %973 = vrot.lane.b32.xlu0 %v840, 126
        %v974 = vpop.permute.xlu0 %973
        %976 = vrot.lane.b32.xlu0 %v754, 125
        %v977 = vpop.permute.xlu0 %976
        %v979 = vsel %vm594, %v968, %v971
        %v980 = vsel %vm698, %v979, %v974
        %v981 = vsel %vm700, %v980, %v977
        %v982 = vrot.slane %v683, 4
        %984 = vrot.lane.b32.xlu0 %v918, 127
        %v985 = vpop.permute.xlu0 %984
        %987 = vrot.lane.b32.xlu0 %v854, 126
        %v988 = vpop.permute.xlu0 %987
        %990 = vrot.lane.b32.xlu0 %v768, 125
        %v991 = vpop.permute.xlu0 %990
        %v993 = vsel %vm594, %v982, %v985
        %v994 = vsel %vm698, %v993, %v988
        %v995 = vsel %vm700, %v994, %v991
        %v996 = vlaneseq
        %v997 = vshrl.u32 %v996, 7
        %v998 = vsub.s32 4, %v997
        %v999 = vrot.slane %v680, %v998
        %v1000 = vmul.f32 %v999, %v678
        %v1001 = vmul.f32 %v1000, 1.442695
        %v1002 = vpow.pop %v1001
        %v1003 = vmul.f32 %v1002, %v950
        %v1004 = vlaneseq
        %v1005 = vshrl.u32 %v1004, 7
        %v1006 = vsub.s32 4, %v1005
        %v1007 = vrot.slane %v726, %v1006
        %1009 = vset.pattern.permute.xlu0 0
        %1010 = vperm.xlu0 %1009, %v981
        %v1011 = vpop.permute.xlu0 %1010
        %v1013 = vmul.f32 %v1007, %v1011
        %v1014 = vadd.f32 %v1003, %v1013
        %v1015 = vcombine.high %v681, %v681
        %v1017 = vunpack.c.l.s4 1966171168
        %v1018 = vunpack.c.0.s8 %v1017
        %v1019 = vlaneseq
        %v1020 = vshrl.u32 %v1019, 7
        %v1021 = vsub.s32 %v1018, %v1020
        %v1022 = vrot.slane %v1015, %v1021
        %v1024 = vunpack.c.l.s4 1966171168
        %v1025 = vunpack.c.0.s8 %v1024
        %v1026 = vlaneseq
        %v1027 = vshrl.u32 %v1026, 7
        %v1028 = vsub.s32 %v1025, %v1027
        %v1029 = vrot.slane %v1022, %v1028
        %v1031 = vmul.f32 %v679, %v1029
        %1033 = vset.pattern.permute.xlu0 0
        %1034 = vperm.xlu0 %1033, %v995
        %v1035 = vpop.permute.xlu0 %1034
        %v1037 = vmul.f32 %v1014, %v1035
        %v1038 = vsel %vm745, %v1037, 0.0
        %v1039 = vrot.slane %v1038, 4
        %v1040 = vadd.f32 %v1038, %v1039
        %v1041 = vrot.slane %v1040, 2
        %v1042 = vadd.f32 %v1040, %v1041
        %v1043 = vrot.slane %v1042, 1
        %v1044 = vadd.f32 %v1042, %v1043
        %v1045 = vadd.f32 %v1031, %v1044
        %1047 = vrot.lane.b32.xlu0 %v968, 127
        %v1048 = vpop.permute.xlu0 %1047
        %1050 = vrot.lane.b32.xlu0 %v904, 126
        %v1051 = vpop.permute.xlu0 %1050
        %1053 = vrot.lane.b32.xlu0 %v840, 125
        %v1054 = vpop.permute.xlu0 %1053
        %v1056 = vsel %vm594, %v693, %v1048
        %v1057 = vsel %vm698, %v1056, %v1051
        %v1058 = vsel %vm700, %v1057, %v1054
        %1060 = vrot.lane.b32.xlu0 %v982, 127
        %v1061 = vpop.permute.xlu0 %1060
        %1063 = vrot.lane.b32.xlu0 %v918, 126
        %v1064 = vpop.permute.xlu0 %1063
        %1066 = vrot.lane.b32.xlu0 %v854, 125
        %v1067 = vpop.permute.xlu0 %1066
        %v1069 = vsel %vm594, %v711, %v1061
        %v1070 = vsel %vm698, %v1069, %v1064
        %v1071 = vsel %vm700, %v1070, %v1067
        %v1072 = vlaneseq
        %v1073 = vshrl.u32 %v1072, 7
        %v1074 = vsub.s32 5, %v1073
        %v1075 = vrot.slane %v680, %v1074
        %v1076 = vmul.f32 %v1075, %v678
        %v1077 = vmul.f32 %v1076, 1.442695
        %v1078 = vpow.pop %v1077
        %v1079 = vmul.f32 %v1078, %v1014
        %v1080 = vlaneseq
        %v1081 = vshrl.u32 %v1080, 7
        %v1082 = vsub.s32 5, %v1081
        %v1083 = vrot.slane %v726, %v1082
        %1085 = vset.pattern.permute.xlu0 0
        %1086 = vperm.xlu0 %1085, %v1058
        %v1087 = vpop.permute.xlu0 %1086
        %v1089 = vmul.f32 %v1083, %v1087
        %v1090 = vadd.f32 %v1079, %v1089
        %v1091 = vcombine.high %v1022, %v1022
        %v1093 = vunpack.c.l.s4 1966171168
        %v1094 = vunpack.c.0.s8 %v1093
        %v1095 = vlaneseq
        %v1096 = vshrl.u32 %v1095, 7
        %v1097 = vsub.s32 %v1094, %v1096
        %v1098 = vrot.slane %v1091, %v1097
        %v1100 = vmul.f32 %v679, %v1098
        %1102 = vset.pattern.permute.xlu0 0
        %1103 = vperm.xlu0 %1102, %v1071
        %v1104 = vpop.permute.xlu0 %1103
        %v1106 = vmul.f32 %v1090, %v1104
        %v1107 = vsel %vm745, %v1106, 0.0
        %v1108 = vrot.slane %v1107, 4
        %v1109 = vadd.f32 %v1107, %v1108
        %v1110 = vrot.slane %v1109, 2
        %v1111 = vadd.f32 %v1109, %v1110
        %v1112 = vrot.slane %v1111, 1
        %v1113 = vadd.f32 %v1111, %v1112
        %v1114 = vadd.f32 %v1100, %v1113
        %1116 = vrot.lane.b32.xlu0 %v693, 127
        %v1117 = vpop.permute.xlu0 %1116
        %1119 = vrot.lane.b32.xlu0 %v968, 126
        %v1120 = vpop.permute.xlu0 %1119
        %1122 = vrot.lane.b32.xlu0 %v904, 125
        %v1123 = vpop.permute.xlu0 %1122
        %v1125 = vsel %vm594, %v689, %v1117
        %v1126 = vsel %vm698, %v1125, %v1120
        %v1127 = vsel %vm700, %v1126, %v1123
        %1129 = vrot.lane.b32.xlu0 %v711, 127
        %v1130 = vpop.permute.xlu0 %1129
        %1132 = vrot.lane.b32.xlu0 %v982, 126
        %v1133 = vpop.permute.xlu0 %1132
        %1135 = vrot.lane.b32.xlu0 %v918, 125
        %v1136 = vpop.permute.xlu0 %1135
        %v1138 = vsel %vm594, %v707, %v1130
        %v1139 = vsel %vm698, %v1138, %v1133
        %v1140 = vsel %vm700, %v1139, %v1136
        %v1141 = vlaneseq
        %v1142 = vshrl.u32 %v1141, 7
        %v1143 = vsub.s32 6, %v1142
        %v1144 = vrot.slane %v680, %v1143
        %v1145 = vmul.f32 %v1144, %v678
        %v1146 = vmul.f32 %v1145, 1.442695
        %v1147 = vpow.pop %v1146
        %v1148 = vmul.f32 %v1147, %v1090
        %v1149 = vlaneseq
        %v1150 = vshrl.u32 %v1149, 7
        %v1151 = vsub.s32 6, %v1150
        %v1152 = vrot.slane %v726, %v1151
        %1154 = vset.pattern.permute.xlu0 0
        %1155 = vperm.xlu0 %1154, %v1127
        %v1156 = vpop.permute.xlu0 %1155
        %v1158 = vmul.f32 %v1152, %v1156
        %v1159 = vadd.f32 %v1148, %v1158
        %v1160 = vcombine.high %v1029, %v1029
        %v1162 = vmul.f32 %v679, %v1160
        %1164 = vset.pattern.permute.xlu0 0
        %1165 = vperm.xlu0 %1164, %v1140
        %v1166 = vpop.permute.xlu0 %1165
        %v1168 = vmul.f32 %v1159, %v1166
        %v1169 = vsel %vm745, %v1168, 0.0
        %v1170 = vrot.slane %v1169, 4
        %v1171 = vadd.f32 %v1169, %v1170
        %v1172 = vrot.slane %v1171, 2
        %v1173 = vadd.f32 %v1171, %v1172
        %v1174 = vrot.slane %v1173, 1
        %v1175 = vadd.f32 %v1173, %v1174
        %v1176 = vadd.f32 %v1162, %v1175
        %1178 = vrot.lane.b32.xlu0 %v689, 127
        %v1179 = vpop.permute.xlu0 %1178
        %1181 = vrot.lane.b32.xlu0 %v693, 126
        %v1182 = vpop.permute.xlu0 %1181
        %1184 = vrot.lane.b32.xlu0 %v968, 125
        %v1185 = vpop.permute.xlu0 %1184
        %v1187 = vsel %vm594, %v685, %v1179
        %v1188 = vsel %vm698, %v1187, %v1182
        %v1189 = vsel %vm700, %v1188, %v1185
        %1191 = vrot.lane.b32.xlu0 %v707, 127
        %v1192 = vpop.permute.xlu0 %1191
        %1194 = vrot.lane.b32.xlu0 %v711, 126
        %v1195 = vpop.permute.xlu0 %1194
        %1197 = vrot.lane.b32.xlu0 %v982, 125
        %v1198 = vpop.permute.xlu0 %1197
        %v1200 = vsel %vm594, %v703, %v1192
        %v1201 = vsel %vm698, %v1200, %v1195
        %v1202 = vsel %vm700, %v1201, %v1198
        %v1203 = vlaneseq
        %v1204 = vshrl.u32 %v1203, 7
        %v1205 = vsub.s32 7, %v1204
        %v1206 = vrot.slane %v680, %v1205
        %v1207 = vmul.f32 %v1206, %v678
        %v1208 = vmul.f32 %v1207, 1.442695
        %v1209 = vpow.pop %v1208
        %v1210 = vmul.f32 %v1209, %v1159
        %v1211 = vlaneseq
        %v1212 = vshrl.u32 %v1211, 7
        %v1213 = vsub.s32 7, %v1212
        %v1214 = vrot.slane %v726, %v1213
        %1216 = vset.pattern.permute.xlu0 0
        %1217 = vperm.xlu0 %1216, %v1189
        %v1218 = vpop.permute.xlu0 %1217
        %v1220 = vmul.f32 %v1214, %v1218
        %v1221 = vadd.f32 %v1210, %v1220
        %v1222 = vcombine.high %v1098, %v1098
        %v1224 = vmul.f32 %v679, %v1222
        %1226 = vset.pattern.permute.xlu0 0
        %1227 = vperm.xlu0 %1226, %v1202
        %v1228 = vpop.permute.xlu0 %1227
        %v1230 = vmul.f32 %v1221, %v1228
        %v1231 = vsel %vm745, %v1230, 0.0
        %v1232 = vrot.slane %v1231, 4
        %v1233 = vadd.f32 %v1231, %v1232
        %v1234 = vrot.slane %v1233, 2
        %v1235 = vadd.f32 %v1233, %v1234
        %v1236 = vrot.slane %v1235, 1
        %v1237 = vadd.f32 %v1235, %v1236
        %v1238 = vadd.f32 %v1224, %v1237
        %v1240 = vlaneseq
        %v1241 = vshrl.u32 %v1240, 7
        %v1242 = vsub.s32 0, %v1241
        %v1243 = vrot.slane %v839, %v1242
        %v1246 = vlaneseq
        %v1247 = vshrl.u32 %v1246, 7
        %v1248 = vsub.s32 0, %v1247
        %v1249 = vrot.slane %v903, %v1248
        %v1252 = vlaneseq
        %v1253 = vshrl.u32 %v1252, 7
        %v1254 = vsub.s32 0, %v1253
        %v1255 = vrot.slane %v967, %v1254
        %v1258 = vlaneseq
        %v1259 = vshrl.u32 %v1258, 7
        %v1260 = vsub.s32 0, %v1259
        %v1261 = vrot.slane %v1045, %v1260
        %v1264 = vlaneseq
        %v1265 = vshrl.u32 %v1264, 7
        %v1266 = vsub.s32 0, %v1265
        %v1267 = vrot.slane %v1114, %v1266
        %v1270 = vlaneseq
        %v1271 = vshrl.u32 %v1270, 7
        %v1272 = vsub.s32 0, %v1271
        %v1273 = vrot.slane %v1176, %v1272
        %v1276 = vlaneseq
        %v1277 = vshrl.u32 %v1276, 7
        %v1278 = vsub.s32 0, %v1277
        %v1279 = vrot.slane %v1238, %v1278
        %v1281 = vsel %vm594, %v753, %v1243
        %v1282 = vsel %vm698, %v1281, %v1249
        %v1283 = vsel %vm700, %v1282, %v1255
        %vm1284 = vcmask 1043456
        %v1285 = vsel %vm1284, %v1283, %v1261
        %vm1286 = vcmask 1044480
        %v1287 = vsel %vm1286, %v1285, %v1267
        %vm1288 = vcmask 1045504
        %v1289 = vsel %vm1288, %v1287, %v1273
        %vm1290 = vcmask 1046528
        %v1291 = vsel %vm1290, %v1289, %v1279
        %1292 = vst.msk [vmem:[#allocation6] sm:$0xff] %vm494, %v1291
        %v1293 = vld [vmem:[#allocation6] sm:$0xff]
        %v1294 = vxor.u32 %v439, 2147483648
        %v1295 = vmul.f32 %v1294, 1.442695
        %v1296 = vpow.pop %v1295
        %v1297 = vadd.f32 %v1296, 1.0
        %v1298 = vrcp.pop %v1297
        %v1299 = vmul.f32 1.0, %v1298
        %v1300 = vmul.f32 %v439, %v1299
        %1302 = vrot.lane.b32.xlu0 %v1300, 96
        %v1303 = vpop.permute.xlu0 %1302
        %v1305 = vmul.f32 %v1293, %v1303
        %v1306 = vld [vmem:[%s9] sm:$0xff]
        %v1307 = vld [vmem:[%s9 + $0x8] sm:$0xff]
        %v1308 = vld [vmem:[%s9 + $0x10] sm:$0xff]
        %v1309 = vld [vmem:[%s9 + $0x18] sm:$0xff]
        %v1311 = vsel %vm494, %v1305, 0
        %1313 = vmatprep.subr.mxu0 0.0
        %1314 = vmatpush1.msra.mxu0 %v1306
        %1315 = vmatprep.subr.mxu0 0.0
        %1316 = vmatpush1.msra.mxu0 %v1307
        %1317 = vmatprep.subr.mxu0 0.0
        %1318 = vmatpush1.msra.mxu0 %v1308
        %1319 = vmatprep.subr.mxu0 0.0
        %1320 = vmatpush1.msra.mxu0 %v1309
        %1321 = vmatprep.subr.mxu0 0.0
        %1322 = vmatpush1.msra.mxu0 0.0
        %1323 = vmatprep.subr.mxu0 0.0
        %1324 = vmatpush1.msra.mxu0 0.0
        %1325 = vmatprep.subr.mxu0 0.0
        %1326 = vmatpush1.msra.mxu0 0.0
        %1327 = vmatprep.subr.mxu0 0.0
        %1328 = vmatpush1.msra.mxu0 0.0
        %1329 = vmatprep.subr.mxu0 0.0
        %1330 = vmatpush1.msra.mxu0 0.0
        %1331 = vmatprep.subr.mxu0 0.0
        %1332 = vmatpush1.msra.mxu0 0.0
        %1333 = vmatprep.subr.mxu0 0.0
        %1334 = vmatpush1.msra.mxu0 0.0
        %1335 = vmatprep.subr.mxu0 0.0
        %1336 = vmatpush1.msra.mxu0 0.0
        %1337 = vmatprep.subr.mxu0 0.0
        %1338 = vmatpush1.msra.mxu0 0.0
        %1339 = vmatprep.subr.mxu0 0.0
        %1340 = vmatpush1.msra.mxu0 0.0
        %1341 = vmatprep.subr.mxu0 0.0
        %1342 = vmatpush1.msra.mxu0 0.0
        %1343 = vmatprep.subr.mxu0 0.0
        %1344 = vmatpush1.msra.mxu0 0.0
        %1345 = vmatprep.subr.mxu0 0.0
        %1346 = vmatpush1.msra.mxu0 0.0
        %1347 = vmatprep.subr.mxu0 0.0
        %1348 = vmatpush1.msra.mxu0 0.0
        %1349 = vmatprep.subr.mxu0 0.0
        %1350 = vmatpush1.msra.mxu0 0.0
        %1351 = vmatprep.subr.mxu0 0.0
        %1352 = vmatpush1.msra.mxu0 0.0
        %1353 = vmatprep.subr.mxu0 0.0
        %1354 = vmatpush1.msra.mxu0 0.0
        %1355 = vmatprep.subr.mxu0 0.0
        %1356 = vmatpush1.msra.mxu0 0.0
        %1357 = vmatprep.subr.mxu0 0.0
        %1358 = vmatpush1.msra.mxu0 0.0
        %1359 = vmatprep.subr.mxu0 0.0
        %1360 = vmatpush1.msra.mxu0 0.0
        %1361 = vmatprep.subr.mxu0 0.0
        %1362 = vmatpush1.msra.mxu0 0.0
        %1363 = vmatprep.subr.mxu0 0.0
        %1364 = vmatpush1.msra.mxu0 0.0
        %1365 = vmatprep.subr.mxu0 0.0
        %1366 = vmatpush1.msra.mxu0 0.0
        %1367 = vmatprep.subr.mxu0 0.0
        %1368 = vmatpush1.msra.mxu0 0.0
        %1369 = vmatprep.subr.mxu0 0.0
        %1370 = vmatpush1.msra.mxu0 0.0
        %1371 = vmatprep.subr.mxu0 0.0
        %1372 = vmatpush1.msra.mxu0 0.0
        %1373 = vmatprep.subr.mxu0 0.0
        %1374 = vmatpush1.msra.mxu0 0.0
        %1375 = vmatprep.subr.mxu0 0.0
        %1376 = vmatpush1.msra.mxu0 0.0
        %1377 = vmatprep.mubr.f32.mxu0 0.0
        %1378 = vmatmul.mubr.f32.gmra.mrb[0].mxu0 %v1311
        %v1379 = vpop.f32.mrb[0].mxu0
        %v1380 = vadd.f32 0.0, %v1379
        %v1381 = vpop.f32.mrb[0].mxu0
        %1382 = vdwg.mxu0
        %1383 = vst [vmem:[%s350] sm:$0xff] %v1380
        %s1384 = sand.u32 %s247, 1
        %s1385 = scalar_lea.sflag [#allocation8], %s1384
        %s1386 = sand.u32 %s247, 1
        %s1387 = smul.addr %s1386, 8
        %s1388 = scalar_lea.vmem [#allocation7], %s1387
        // Predicated region
        $region61: #{tpu_custom_call.1} parent=59 // pred_check
          %p1389 = pneg %p257
        $region62: #{tpu_custom_call.1} parent=59 // pred_check_branch
          %1391 = sbr.rel (%p1389) target = $region64
        $region63: #{tpu_custom_call.1} parent=59 // pred_region
          %s1393 = ssub.s32 128, 128
          %1394 = vsyncadd %s1385, %s1393
          %s1395 = smul.addr %s24, 128
          %s1396 = scalar_lea.hbm %s10, %s1395
          %s1398 = sshll.u32 %s1388, 4
          %s1399 = int_to_ptr.vmem [resolvable:$true] %s1398
          %1401 = dma.vmem_to_hbm [thread:$0]  %s1399, 128, %s1396, %s1385
        $region64: #{tpu_custom_call.1} parent=59 // pred_fallthru
          _
      $region60: #{tpu_custom_call.1} parent=5 // pred_fallthru
        _
      %p1402 = scmp.le.s32.totalorder 2, %s19
      // Predicated region
      $region65: #{tpu_custom_call.1} parent=5 // pred_check
        %p1403 = pneg %p1402
      $region66: #{tpu_custom_call.1} parent=5 // pred_check_branch
        %1405 = sbr.rel (%p1403) target = $region68
      $region67: #{tpu_custom_call.1} parent=5 // pred_region
        %s1406 = ssub.s32 %s19, 2
        // Predicated region
        $region69: #{tpu_custom_call.1} parent=67 // pred_check
          %p1407 = pneg %p263
        $region70: #{tpu_custom_call.1} parent=67 // pred_check_branch
          %1409 = sbr.rel (%p1407) target = $region72
        $region71: #{tpu_custom_call.1} parent=67 // pred_region
          %s1410 = sand.u32 %s248, 1
          %s1411 = scalar_lea.sflag [#allocation8], %s1410
          %s1412 = sand.u32 %s248, 1
          %s1413 = smul.addr %s1412, 8
          %s1414 = scalar_lea.vmem [#allocation7], %s1413
          %1415 = dma.done %s1411, 128
        $region72: #{tpu_custom_call.1} parent=67 // pred_fallthru
          _
      $region68: #{tpu_custom_call.1} parent=5 // pred_fallthru
        _
    $region6: #{tpu_custom_call.1} parent=1 // loop_footer
      %s23 = sadd.s32 1, %s19
    $region7: #{tpu_custom_call.1} parent=1 // loop_footer_branch
      %18 = sbr.rel target = $region3
    $region8: #{tpu_custom_call.1} parent=1 // loop_exit
      _
    %1416 = vsyncpa [#allocation8], 1
    %s1417 = scalar_lea.sflag [#allocation8], 1
    %1418 = vsyncpa %s1417, 1

</llo_original>
